<compile_context>
chip_gen: v5e
topology: v5e:2x2
jax: 0.10.0
libtpu: 0.0.40
codegen_flags: <defaults>
</compile_context>

<pallas_src>
import math

import jax
import jax.numpy as jnp
from jax.experimental import pallas as pl
from jax.experimental.pallas import tpu as pltpu

# ---- static config (small synthetic shapes consistent with the module) ----
B = 2                 # batch
L = 16                # sequence length
BERT_DIM = 32         # opt.bert_dim
HEADS = 4             # opt.attention_heads
ATTDIM = 100          # hard-coded attdim in GCNBert
DK = ATTDIM // HEADS  # 25 (true head dim; used for the 1/sqrt(dk) scale)
NUM_LAYERS = 2        # opt.num_layers
POLARITIES = 3        # opt.polarities_dim
VOCAB = 64
MAX_POS = 32
LN_EPS = 1e-6
NEG_INF = -1000000000.0

# ---- padded (lane-aligned) sizes used inside the kernel ----
AD_P = 128            # ATTDIM padded 100 -> 128
DK_P = 32             # per-head dim padded 25 -> 32 (HEADS * 32 = 128)
HP = 8                # head count padded 4 -> 8 for tiny intermediates
HL = HEADS * L        # 64: stacked (head, query-row) dimension
OUT_P = 128           # logits lane-padded 3 -> 128


def acegcn_kernel(seq_ref, src_mask_ref, attn_mask_ref, syn_ref,
                  ln_g_ref, ln_b_ref, wxx_w_ref, wxx_b_ref,
                  wq_ref, bq_ref, wk_ref, bk_ref, hmask_ref,
                  gw_ref, gb_ref,
                  kron_ref, e_ref, wx1_ref, w2big_ref, wxb_ref,
                  wagg_ref, bagg_ref, wc_ref, bc_ref,
                  logits_ref):
    f32 = jnp.float32
    x = seq_ref[0]                                        # [L, BERT_DIM]

    # --- custom LayerNorm (torch.std is unbiased; divides by (std + eps)) ---
    mean = jnp.mean(x, axis=-1, keepdims=True)
    diff = x - mean
    var_u = jnp.sum(diff * diff, axis=-1, keepdims=True) * (1.0 / (BERT_DIM - 1))
    inv_std = pl.reciprocal(jnp.sqrt(var_u) + LN_EPS, approx=True)
    xn = ln_g_ref[...] * diff * inv_std + ln_b_ref[...]

    # --- Wxx : bert_dim -> attdim (padded cols 100..127 are zero) ---
    g = jnp.dot(xn, wxx_w_ref[...], preferred_element_type=f32) + wxx_b_ref[...]   # [L, 128]

    # --- MultiHeadAttention producing adjacency weights, all heads fused ---
    q = jnp.dot(g, wq_ref[...], preferred_element_type=f32) + bq_ref[...]          # [L, 128]
    k = jnp.dot(g, wk_ref[...], preferred_element_type=f32) + bk_ref[...]          # [L, 128]
    # head-stack Q along sublanes, mask to head blocks, one score matmul for all heads
    q_stack = jnp.concatenate([q] * HEADS, axis=0) * hmask_ref[...]                # [HL, 128]
    scores = jax.lax.dot_general(q_stack, k, (((1,), (1,)), ((), ())),
                                 preferred_element_type=f32) * (1.0 / math.sqrt(DK))
    smask = src_mask_ref[0]                                                        # [1, L]
    scores = jnp.where(smask == 0.0, NEG_INF, scores)                              # key mask
    scores = scores + syn_ref[0]                                                   # [HL, L]
    m = jnp.max(scores, axis=-1, keepdims=True)
    e = jnp.exp(scores - m)
    adj = e * pl.reciprocal(jnp.sum(e, axis=-1, keepdims=True), approx=True)       # [HL, L]

    # --- GCN layers ---
    gcn = g
    layer_list = [g]
    for _ in range(NUM_LAYERS):
        # mean over heads commutes with the matmul: one adjacency matmul per layer
        adj_mean = adj[0:L, :]
        for h in range(1, HEADS):
            adj_mean = adj_mean + adj[h * L:(h + 1) * L, :]
        adj_mean = adj_mean * (1.0 / HEADS)
        ax = jnp.dot(adj_mean, gcn, preferred_element_type=f32)                    # [L, 128]
        ax = jnp.dot(ax, gw_ref[...], preferred_element_type=f32) + gb_ref[...]
        gcn = jnp.maximum(ax, 0.0)                                                 # ReLU
        layer_list.append(gcn)

        # edge update Wx(cat[adj_perm, gcn_j, gcn_i]) decomposed & vectorized over heads:
        #   new_adj[h'*L+i, j] = sum_h wxa[h,h']*adj[h*L+i, j]     (kron matmul)
        #                      + gcn[j] . wx1[:, h']               (E @ r1t)
        #                      + gcn[i] . wx2[:, h']               (c_col, lane-reduce)
        #                      + wxb[h']
        r1t = jax.lax.dot_general(wx1_ref[...], gcn, (((0,), (1,)), ((), ())),
                                  preferred_element_type=f32)                      # [HP, L]
        t1 = jnp.dot(e_ref[...], r1t, preferred_element_type=f32)                  # [HL, L]
        mix = jnp.dot(kron_ref[...], adj, preferred_element_type=f32)              # [HL, L]
        g_stack = jnp.concatenate([gcn] * HEADS, axis=0)                           # [HL, 128]
        c_col = jnp.sum(g_stack * w2big_ref[...], axis=-1, keepdims=True)          # [HL, 1]
        adj = mix + t1 + c_col + wxb_ref[...]

    # --- aggregate_W over concatenated layer outputs (single wide matmul) + ReLU ---
    cat = jnp.concatenate(layer_list, axis=-1)                                     # [L, 3*128]
    node = jnp.maximum(
        jnp.dot(cat, wagg_ref[...], preferred_element_type=f32) + bagg_ref[...], 0.0)

    # --- masked mean pooling + classifier (lane-padded logits) ---
    am = attn_mask_ref[0]                                                          # [1, L]
    valid = jnp.maximum(jnp.sum(am, axis=1, keepdims=True), 1.0)                   # [1, 1]
    pooled = jnp.sum(node, axis=0, keepdims=True) * pl.reciprocal(valid, approx=True)
    logits_ref[0] = jnp.dot(pooled, wc_ref[...], preferred_element_type=f32) + bc_ref[...]


def _prepare_kernel_params(p):
    """Host-side zero-padding / restructuring to 128-lane, head-vectorized layouts."""
    f32 = jnp.float32

    def pad2(a, rows, cols):
        out = jnp.zeros((rows, cols), f32)
        return out.at[:a.shape[0], :a.shape[1]].set(a)

    def head_pad(w, b):  # place head h at columns [h*DK_P, h*DK_P + DK)
        wp = jnp.zeros((AD_P, AD_P), f32)
        bp = jnp.zeros((1, AD_P), f32)
        for h in range(HEADS):
            wp = wp.at[:ATTDIM, h * DK_P:h * DK_P + DK].set(w[:, h * DK:(h + 1) * DK])
            bp = bp.at[:, h * DK_P:h * DK_P + DK].set(b[:, h * DK:(h + 1) * DK])
        return wp, bp

    wq_p, bq_p = head_pad(p["wq"], p["bq"])
    wk_p, bk_p = head_pad(p["wk"], p["bk"])

    wxa = p["wx"][:HEADS]                       # [H, H]   adjacency mixing block
    wx1 = p["wx"][HEADS:HEADS + ATTDIM]         # [AD, H]  pairs with gcn[j]
    wx2 = p["wx"][HEADS + ATTDIM:]              # [AD, H]  pairs with gcn[i]

    kron = jnp.kron(wxa.T, jnp.eye(L, dtype=f32))                                   # [HL, HL]
    e_mat = pad2(jnp.kron(jnp.eye(HEADS, dtype=f32), jnp.ones((L, 1), f32)), HL, HP)
    hmask = jnp.kron(jnp.eye(HEADS, dtype=f32), jnp.ones((L, DK_P), f32))           # [HL, 128]
    w2big = jnp.repeat(pad2(wx2, AD_P, HEADS).T, L, axis=0)                         # [HL, 128]
    wxb_col = jnp.repeat(p["wxb"].reshape(HEADS, 1), L, axis=0)                     # [HL, 1]

    wagg_cat = jnp.zeros(((NUM_LAYERS + 1) * AD_P, AD_P), f32)
    for kk in range(NUM_LAYERS + 1):
        wagg_cat = wagg_cat.at[kk * AD_P:kk * AD_P + ATTDIM, :ATTDIM].set(
            p["wagg"][kk * ATTDIM:(kk + 1) * ATTDIM])

    return dict(
        ln_g=p["ln_g"], ln_b=p["ln_b"],
        wxx_w=pad2(p["wxx_w"], BERT_DIM, AD_P), wxx_b=pad2(p["wxx_b"], 1, AD_P),
        wq=wq_p, bq=bq_p, wk=wk_p, bk=bk_p, hmask=hmask,
        gw=pad2(p["gw"], AD_P, AD_P), gb=pad2(p["gb"], 1, AD_P),
        kron=kron, e_mat=e_mat, wx1=pad2(wx1, AD_P, HP), w2big=w2big, wxb_col=wxb_col,
        wagg=wagg_cat, bagg=pad2(p["bagg"], 1, AD_P),
        wc=pad2(p["wc"], AD_P, OUT_P), bc=pad2(p["bc"], 1, OUT_P),
    )


def acegcn_forward(seq, src_mask, attn_mask, syntax, params):
    kp = _prepare_kernel_params(params)

    def full(shape):
        n = len(shape)
        return pl.BlockSpec(shape, lambda b, _n=n: (0,) * _n)

    in_specs = [
        pl.BlockSpec((1, L, BERT_DIM), lambda b: (b, 0, 0)),       # sequence_output
        pl.BlockSpec((1, 1, L), lambda b: (b, 0, 0)),              # src_mask
        pl.BlockSpec((1, 1, L), lambda b: (b, 0, 0)),              # mask_ids (attention mask)
        pl.BlockSpec((1, HL, L), lambda b: (b, 0, 0)),             # syntax, head-stacked
        full((1, BERT_DIM)), full((1, BERT_DIM)),                  # layernorm a_2, b_2
        full((BERT_DIM, AD_P)), full((1, AD_P)),                   # Wxx
        full((AD_P, AD_P)), full((1, AD_P)),                       # attn linear 0 (query)
        full((AD_P, AD_P)), full((1, AD_P)),                       # attn linear 1 (key)
        full((HL, AD_P)),                                          # head-block mask
        full((AD_P, AD_P)), full((1, AD_P)),                       # W
        full((HL, HL)), full((HL, HP)),                            # kron mix, head expand E
        full((AD_P, HP)), full((HL, AD_P)), full((HL, 1)),         # Wx node blocks + bias
        full(((NUM_LAYERS + 1) * AD_P, AD_P)), full((1, AD_P)),    # aggregate_W
        full((AD_P, OUT_P)), full((1, OUT_P)),                     # classifier
    ]
    out = pl.pallas_call(
        acegcn_kernel,
        out_shape=jax.ShapeDtypeStruct((B, 1, OUT_P), jnp.float32),
        grid=(B,),
        in_specs=in_specs,
        out_specs=pl.BlockSpec((1, 1, OUT_P), lambda b: (b, 0, 0)),
        compiler_params=pltpu.CompilerParams(dimension_semantics=("parallel",)),
    )(seq, src_mask[:, None, :], attn_mask[:, None, :], syntax.reshape(B, HL, L),
      kp["ln_g"], kp["ln_b"], kp["wxx_w"], kp["wxx_b"],
      kp["wq"], kp["bq"], kp["wk"], kp["bk"], kp["hmask"],
      kp["gw"], kp["gb"],
      kp["kron"], kp["e_mat"], kp["wx1"], kp["w2big"], kp["wxb_col"],
      kp["wagg"], kp["bagg"], kp["wc"], kp["bc"])
    return out[:, 0, :POLARITIES], None   # (logits, None), matching ACEGCNClassifier.forward


def reference_forward(seq, src_mask, attn_mask, syntax, params):
    """Pure-JAX reference faithful to the PyTorch graph (concat-based Wx / aggregate_W)."""
    mean = seq.mean(-1, keepdims=True)
    diff = seq - mean
    std = jnp.sqrt((diff * diff).sum(-1, keepdims=True) / (BERT_DIM - 1))
    xn = params["ln_g"] * diff / (std + LN_EPS) + params["ln_b"]
    g = xn @ params["wxx_w"] + params["wxx_b"]
    q = (g @ params["wq"] + params["bq"]).reshape(B, L, HEADS, DK).transpose(0, 2, 1, 3)
    k = (g @ params["wk"] + params["bk"]).reshape(B, L, HEADS, DK).transpose(0, 2, 1, 3)
    scores = jnp.einsum("bhqd,bhkd->bhqk", q, k) / math.sqrt(DK)
    scores = jnp.where(src_mask[:, None, None, :] == 0.0, NEG_INF, scores)
    scores = scores + syntax
    weight_adj = jax.nn.softmax(scores, axis=-1)
    gcn = g
    layer_list = [g]
    for _ in range(NUM_LAYERS):
        ax = jnp.einsum("bhqk,bkd->bhqd", weight_adj, gcn).mean(axis=1)
        ax = ax @ params["gw"] + params["gb"]
        gcn = jax.nn.relu(ax)
        layer_list.append(gcn)
        wa = weight_adj.transpose(0, 2, 3, 1)
        n1 = jnp.broadcast_to(gcn[:, None, :, :], (B, L, L, ATTDIM))
        n2 = n1.transpose(0, 2, 1, 3)
        edge_n = jnp.concatenate([wa, n1, n2], axis=-1)
        edge = edge_n @ params["wx"] + params["wxb"]
        weight_adj = edge.transpose(0, 3, 1, 2)
    outputs = jnp.concatenate(layer_list, axis=-1)
    node = jax.nn.relu(outputs @ params["wagg"] + params["bagg"])
    valid = jnp.maximum(attn_mask.sum(axis=1, keepdims=True), 1.0)
    pooled = node.sum(axis=1) / valid
    return pooled @ params["wc"] + params["bc"]


if __name__ == "__main__":
    key = jax.random.PRNGKey(0)
    ks = jax.random.split(key, 20)

    def nrm(k, shape, scale):
        return jax.random.normal(k, shape, dtype=jnp.float32) * scale

    params = {
        "ln_g": jnp.ones((1, BERT_DIM), jnp.float32),
        "ln_b": jnp.zeros((1, BERT_DIM), jnp.float32),
        "wxx_w": nrm(ks[0], (BERT_DIM, ATTDIM), 0.1),
        "wxx_b": nrm(ks[1], (1, ATTDIM), 0.05),
        "wq": nrm(ks[2], (ATTDIM, ATTDIM), 0.1),
        "bq": nrm(ks[3], (1, ATTDIM), 0.05),
        "wk": nrm(ks[4], (ATTDIM, ATTDIM), 0.1),
        "bk": nrm(ks[5], (1, ATTDIM), 0.05),
        "gw": nrm(ks[6], (ATTDIM, ATTDIM), 0.1),
        "gb": nrm(ks[7], (1, ATTDIM), 0.05),
        "wx": nrm(ks[8], (HEADS + 2 * ATTDIM, HEADS), 0.1),
        "wxb": nrm(ks[9], (1, HEADS), 0.05),
        "wagg": nrm(ks[10], (ATTDIM * (NUM_LAYERS + 1), ATTDIM), 0.05),
        "bagg": nrm(ks[11], (1, ATTDIM), 0.05),
        "wc": nrm(ks[12], (ATTDIM, POLARITIES), 0.1),
        "bc": nrm(ks[13], (1, POLARITIES), 0.05),
    }

    # deterministic example inputs ("BERT" output via embedding lookup + identity encoder)
    input_ids = jax.random.randint(ks[14], (B, L), 0, VOCAB)
    pos_ids = jnp.broadcast_to(jnp.arange(L), (B, L))
    word_emb = nrm(ks[15], (VOCAB, BERT_DIM), 0.5)
    pos_emb = nrm(ks[16], (MAX_POS, BERT_DIM), 0.1)
    seq = word_emb[input_ids] + pos_emb[pos_ids]

    lengths = jnp.array([L, L - 4], dtype=jnp.int32)
    pos = jnp.arange(L)[None, :]
    src_mask = (pos < lengths[:, None]).astype(jnp.float32)   # src_mask_batch  [B, L]
    attn_mask = src_mask                                      # mask_ids_batch  [B, L]
    syntax = nrm(ks[17], (B, HEADS, L, L), 0.5)               # syntax_matrix_batch

    logits, _ = acegcn_forward(seq, src_mask, attn_mask, syntax, params)
    logits = jax.block_until_ready(logits)

    ref = reference_forward(seq, src_mask, attn_mask, syntax, params)
    assert logits.shape == (B, POLARITIES)
    assert bool(jnp.allclose(logits, ref, atol=5e-3, rtol=5e-3)), (logits, ref)
    print("KERNEL_OK")
</pallas_src>

<mosaic_0001>
module attributes {stable_mosaic.version = 11 : i64} {
  func.func @acegcn_kernel(%arg0: i32, %arg1: memref<1x16x32xf32, #tpu.memory_space<vmem>>, %arg2: memref<1x1x16xf32, #tpu.memory_space<vmem>>, %arg3: memref<1x1x16xf32, #tpu.memory_space<vmem>>, %arg4: memref<1x64x16xf32, #tpu.memory_space<vmem>>, %arg5: memref<1x32xf32, #tpu.memory_space<vmem>>, %arg6: memref<1x32xf32, #tpu.memory_space<vmem>>, %arg7: memref<32x128xf32, #tpu.memory_space<vmem>>, %arg8: memref<1x128xf32, #tpu.memory_space<vmem>>, %arg9: memref<128x128xf32, #tpu.memory_space<vmem>>, %arg10: memref<1x128xf32, #tpu.memory_space<vmem>>, %arg11: memref<128x128xf32, #tpu.memory_space<vmem>>, %arg12: memref<1x128xf32, #tpu.memory_space<vmem>>, %arg13: memref<64x128xf32, #tpu.memory_space<vmem>>, %arg14: memref<128x128xf32, #tpu.memory_space<vmem>>, %arg15: memref<1x128xf32, #tpu.memory_space<vmem>>, %arg16: memref<64x64xf32, #tpu.memory_space<vmem>>, %arg17: memref<64x8xf32, #tpu.memory_space<vmem>>, %arg18: memref<128x8xf32, #tpu.memory_space<vmem>>, %arg19: memref<64x128xf32, #tpu.memory_space<vmem>>, %arg20: memref<64x1xf32, #tpu.memory_space<vmem>>, %arg21: memref<384x128xf32, #tpu.memory_space<vmem>>, %arg22: memref<1x128xf32, #tpu.memory_space<vmem>>, %arg23: memref<128x128xf32, #tpu.memory_space<vmem>>, %arg24: memref<1x128xf32, #tpu.memory_space<vmem>>, %arg25: memref<1x1x128xf32, #tpu.memory_space<vmem>>) attributes {dimension_semantics = [#tpu.dimension_semantics<parallel>], iteration_bounds = array<i64: 2>, scalar_prefetch = 0 : i64, scratch_operands = 0 : i64, tpu.core_type = #tpu.core_type<tc>, window_params = [{transform_indices = @transform_0, window_bounds = array<i64: 1, 16, 32>}, {transform_indices = @transform_1, window_bounds = array<i64: 1, 1, 16>}, {transform_indices = @transform_2, window_bounds = array<i64: 1, 1, 16>}, {transform_indices = @transform_3, window_bounds = array<i64: 1, 64, 16>}, {pipeline_mode = #tpu.pipeline_mode<synchronous>, transform_indices = @transform_4, window_bounds = array<i64: 1, 32>}, {pipeline_mode = #tpu.pipeline_mode<synchronous>, transform_indices = @transform_5, window_bounds = array<i64: 1, 32>}, {pipeline_mode = #tpu.pipeline_mode<synchronous>, transform_indices = @transform_6, window_bounds = array<i64: 32, 128>}, {pipeline_mode = #tpu.pipeline_mode<synchronous>, transform_indices = @transform_7, window_bounds = array<i64: 1, 128>}, {pipeline_mode = #tpu.pipeline_mode<synchronous>, transform_indices = @transform_8, window_bounds = array<i64: 128, 128>}, {pipeline_mode = #tpu.pipeline_mode<synchronous>, transform_indices = @transform_9, window_bounds = array<i64: 1, 128>}, {pipeline_mode = #tpu.pipeline_mode<synchronous>, transform_indices = @transform_10, window_bounds = array<i64: 128, 128>}, {pipeline_mode = #tpu.pipeline_mode<synchronous>, transform_indices = @transform_11, window_bounds = array<i64: 1, 128>}, {pipeline_mode = #tpu.pipeline_mode<synchronous>, transform_indices = @transform_12, window_bounds = array<i64: 64, 128>}, {pipeline_mode = #tpu.pipeline_mode<synchronous>, transform_indices = @transform_13, window_bounds = array<i64: 128, 128>}, {pipeline_mode = #tpu.pipeline_mode<synchronous>, transform_indices = @transform_14, window_bounds = array<i64: 1, 128>}, {pipeline_mode = #tpu.pipeline_mode<synchronous>, transform_indices = @transform_15, window_bounds = array<i64: 64, 64>}, {pipeline_mode = #tpu.pipeline_mode<synchronous>, transform_indices = @transform_16, window_bounds = array<i64: 64, 8>}, {pipeline_mode = #tpu.pipeline_mode<synchronous>, transform_indices = @transform_17, window_bounds = array<i64: 128, 8>}, {pipeline_mode = #tpu.pipeline_mode<synchronous>, transform_indices = @transform_18, window_bounds = array<i64: 64, 128>}, {pipeline_mode = #tpu.pipeline_mode<synchronous>, transform_indices = @transform_19, window_bounds = array<i64: 64, 1>}, {pipeline_mode = #tpu.pipeline_mode<synchronous>, transform_indices = @transform_20, window_bounds = array<i64: 384, 128>}, {pipeline_mode = #tpu.pipeline_mode<synchronous>, transform_indices = @transform_21, window_bounds = array<i64: 1, 128>}, {pipeline_mode = #tpu.pipeline_mode<synchronous>, transform_indices = @transform_22, window_bounds = array<i64: 128, 128>}, {pipeline_mode = #tpu.pipeline_mode<synchronous>, transform_indices = @transform_23, window_bounds = array<i64: 1, 128>}, {transform_indices = @transform_24, window_bounds = array<i64: 1, 1, 128>}]} {
    %c0 = arith.constant 0 : index
    %c0_0 = arith.constant 0 : index
    %c0_1 = arith.constant 0 : index
    %0 = vector.load %arg1[%c0, %c0_0, %c0_1] : memref<1x16x32xf32, #tpu.memory_space<vmem>>, vector<1x16x32xf32>
    %1 = vector.shape_cast %0 : vector<1x16x32xf32> to vector<16x32xf32>
    %cst = arith.constant dense<0.000000e+00> : vector<16xf32>
    %2 = vector.multi_reduction <add>, %1, %cst [1] : vector<16x32xf32> to vector<16xf32>
    %3 = vector.shape_cast %2 : vector<16xf32> to vector<16x1xf32>
    %cst_2 = arith.constant 3.200000e+01 : f32
    %4 = vector.broadcast %cst_2 : f32 to vector<16x1xf32>
    %5 = arith.divf %3, %4 : vector<16x1xf32>
    %6 = vector.broadcast %5 : vector<16x1xf32> to vector<16x32xf32>
    %7 = arith.subf %1, %6 : vector<16x32xf32>
    %8 = arith.mulf %7, %7 : vector<16x32xf32>
    %cst_3 = arith.constant dense<0.000000e+00> : vector<16xf32>
    %9 = vector.multi_reduction <add>, %8, %cst_3 [1] : vector<16x32xf32> to vector<16xf32>
    %10 = vector.shape_cast %9 : vector<16xf32> to vector<16x1xf32>
    %cst_4 = arith.constant 0.0322580636 : f32
    %11 = vector.broadcast %cst_4 : f32 to vector<16x1xf32>
    %12 = arith.mulf %10, %11 : vector<16x1xf32>
    %13 = math.sqrt %12 : vector<16x1xf32>
    %cst_5 = arith.constant 9.99999997E-7 : f32
    %14 = vector.broadcast %cst_5 : f32 to vector<16x1xf32>
    %15 = arith.addf %13, %14 : vector<16x1xf32>
    %16 = tpu.reciprocal %15 {approx = true} : vector<16x1xf32> -> vector<16x1xf32>
    %c0_6 = arith.constant 0 : index
    %c0_7 = arith.constant 0 : index
    %17 = vector.load %arg5[%c0_6, %c0_7] : memref<1x32xf32, #tpu.memory_space<vmem>>, vector<1x32xf32>
    %18 = vector.broadcast %17 : vector<1x32xf32> to vector<16x32xf32>
    %19 = arith.mulf %18, %7 : vector<16x32xf32>
    %20 = vector.broadcast %16 : vector<16x1xf32> to vector<16x32xf32>
    %21 = arith.mulf %19, %20 : vector<16x32xf32>
    %c0_8 = arith.constant 0 : index
    %c0_9 = arith.constant 0 : index
    %22 = vector.load %arg6[%c0_8, %c0_9] : memref<1x32xf32, #tpu.memory_space<vmem>>, vector<1x32xf32>
    %23 = vector.broadcast %22 : vector<1x32xf32> to vector<16x32xf32>
    %24 = arith.addf %21, %23 : vector<16x32xf32>
    %c0_10 = arith.constant 0 : index
    %c0_11 = arith.constant 0 : index
    %25 = vector.load %arg7[%c0_10, %c0_11] : memref<32x128xf32, #tpu.memory_space<vmem>>, vector<32x128xf32>
    %cst_12 = arith.constant dense<0.000000e+00> : vector<16x128xf32>
    %26 = tpu.matmul %24, %25, %cst_12 {dimension_numbers = #tpu.dot_dimension_numbers<[1], [0], [0], [1], [0, 0, 1, 1], [], []>} : vector<16x32xf32>, vector<32x128xf32>, vector<16x128xf32> -> vector<16x128xf32>
    %c0_13 = arith.constant 0 : index
    %c0_14 = arith.constant 0 : index
    %27 = vector.load %arg8[%c0_13, %c0_14] : memref<1x128xf32, #tpu.memory_space<vmem>>, vector<1x128xf32>
    %28 = vector.broadcast %27 : vector<1x128xf32> to vector<16x128xf32>
    %29 = arith.addf %26, %28 : vector<16x128xf32>
    %c0_15 = arith.constant 0 : index
    %c0_16 = arith.constant 0 : index
    %30 = vector.load %arg9[%c0_15, %c0_16] : memref<128x128xf32, #tpu.memory_space<vmem>>, vector<128x128xf32>
    %cst_17 = arith.constant dense<0.000000e+00> : vector<16x128xf32>
    %31 = tpu.matmul %29, %30, %cst_17 {dimension_numbers = #tpu.dot_dimension_numbers<[1], [0], [0], [1], [0, 0, 1, 1], [], []>} : vector<16x128xf32>, vector<128x128xf32>, vector<16x128xf32> -> vector<16x128xf32>
    %c0_18 = arith.constant 0 : index
    %c0_19 = arith.constant 0 : index
    %32 = vector.load %arg10[%c0_18, %c0_19] : memref<1x128xf32, #tpu.memory_space<vmem>>, vector<1x128xf32>
    %33 = vector.broadcast %32 : vector<1x128xf32> to vector<16x128xf32>
    %34 = arith.addf %31, %33 : vector<16x128xf32>
    %c0_20 = arith.constant 0 : index
    %c0_21 = arith.constant 0 : index
    %35 = vector.load %arg11[%c0_20, %c0_21] : memref<128x128xf32, #tpu.memory_space<vmem>>, vector<128x128xf32>
    %cst_22 = arith.constant dense<0.000000e+00> : vector<16x128xf32>
    %36 = tpu.matmul %29, %35, %cst_22 {dimension_numbers = #tpu.dot_dimension_numbers<[1], [0], [0], [1], [0, 0, 1, 1], [], []>} : vector<16x128xf32>, vector<128x128xf32>, vector<16x128xf32> -> vector<16x128xf32>
    %c0_23 = arith.constant 0 : index
    %c0_24 = arith.constant 0 : index
    %37 = vector.load %arg12[%c0_23, %c0_24] : memref<1x128xf32, #tpu.memory_space<vmem>>, vector<1x128xf32>
    %38 = vector.broadcast %37 : vector<1x128xf32> to vector<16x128xf32>
    %39 = arith.addf %36, %38 : vector<16x128xf32>
    %40 = tpu.concatenate %34, %34, %34, %34 in 0 : vector<16x128xf32>, vector<16x128xf32>, vector<16x128xf32>, vector<16x128xf32> -> vector<64x128xf32>
    %c0_25 = arith.constant 0 : index
    %c0_26 = arith.constant 0 : index
    %41 = vector.load %arg13[%c0_25, %c0_26] : memref<64x128xf32, #tpu.memory_space<vmem>>, vector<64x128xf32>
    %42 = arith.mulf %40, %41 : vector<64x128xf32>
    %cst_27 = arith.constant dense<0.000000e+00> : vector<64x16xf32>
    %43 = tpu.matmul %42, %39, %cst_27 {dimension_numbers = #tpu.dot_dimension_numbers<[1], [1], [0], [0], [0, 0, 1, 0], [], []>} : vector<64x128xf32>, vector<16x128xf32>, vector<64x16xf32> -> vector<64x16xf32>
    %cst_28 = arith.constant 2.000000e-01 : f32
    %44 = vector.broadcast %cst_28 : f32 to vector<64x16xf32>
    %45 = arith.mulf %43, %44 : vector<64x16xf32>
    %c0_29 = arith.constant 0 : index
    %c0_30 = arith.constant 0 : index
    %c0_31 = arith.constant 0 : index
    %46 = vector.load %arg2[%c0_29, %c0_30, %c0_31] : memref<1x1x16xf32, #tpu.memory_space<vmem>>, vector<1x1x16xf32>
    %47 = vector.shape_cast %46 : vector<1x1x16xf32> to vector<1x16xf32>
    %cst_32 = arith.constant 0.000000e+00 : f32
    %48 = vector.broadcast %cst_32 : f32 to vector<1x16xf32>
    %49 = arith.cmpf oeq, %47, %48 : vector<1x16xf32>
    %cst_33 = arith.constant -1.000000e+09 : f32
    %50 = vector.shape_cast %49 : vector<1x16xi1> to vector<1x16xi1>
    %51 = vector.broadcast %50 : vector<1x16xi1> to vector<64x16xi1>
    %52 = vector.broadcast %cst_33 : f32 to vector<64x16xf32>
    %53 = arith.select %51, %52, %45 : vector<64x16xi1>, vector<64x16xf32>
    %c0_34 = arith.constant 0 : index
    %c0_35 = arith.constant 0 : index
    %c0_36 = arith.constant 0 : index
    %54 = vector.load %arg4[%c0_34, %c0_35, %c0_36] : memref<1x64x16xf32, #tpu.memory_space<vmem>>, vector<1x64x16xf32>
    %55 = vector.shape_cast %54 : vector<1x64x16xf32> to vector<64x16xf32>
    %56 = arith.addf %53, %55 : vector<64x16xf32>
    %cst_37 = arith.constant dense<0xFF800000> : vector<64xf32>
    %57 = vector.multi_reduction <maximumf>, %56, %cst_37 [1] : vector<64x16xf32> to vector<64xf32>
    %58 = vector.shape_cast %57 : vector<64xf32> to vector<64x1xf32>
    %59 = vector.broadcast %58 : vector<64x1xf32> to vector<64x16xf32>
    %60 = arith.subf %56, %59 : vector<64x16xf32>
    %61 = math.exp %60 : vector<64x16xf32>
    %cst_38 = arith.constant dense<0.000000e+00> : vector<64xf32>
    %62 = vector.multi_reduction <add>, %61, %cst_38 [1] : vector<64x16xf32> to vector<64xf32>
    %63 = vector.shape_cast %62 : vector<64xf32> to vector<64x1xf32>
    %64 = tpu.reciprocal %63 {approx = true} : vector<64x1xf32> -> vector<64x1xf32>
    %65 = vector.broadcast %64 : vector<64x1xf32> to vector<64x16xf32>
    %66 = arith.mulf %61, %65 : vector<64x16xf32>
    %67 = vector.extract_strided_slice %66 {offsets = [0, 0], sizes = [16, 16], strides = [1, 1]} : vector<64x16xf32> to vector<16x16xf32>
    %68 = vector.extract_strided_slice %66 {offsets = [16, 0], sizes = [16, 16], strides = [1, 1]} : vector<64x16xf32> to vector<16x16xf32>
    %69 = arith.addf %67, %68 : vector<16x16xf32>
    %70 = vector.extract_strided_slice %66 {offsets = [32, 0], sizes = [16, 16], strides = [1, 1]} : vector<64x16xf32> to vector<16x16xf32>
    %71 = arith.addf %69, %70 : vector<16x16xf32>
    %72 = vector.extract_strided_slice %66 {offsets = [48, 0], sizes = [16, 16], strides = [1, 1]} : vector<64x16xf32> to vector<16x16xf32>
    %73 = arith.addf %71, %72 : vector<16x16xf32>
    %cst_39 = arith.constant 2.500000e-01 : f32
    %74 = vector.broadcast %cst_39 : f32 to vector<16x16xf32>
    %75 = arith.mulf %73, %74 : vector<16x16xf32>
    %cst_40 = arith.constant dense<0.000000e+00> : vector<16x128xf32>
    %76 = tpu.matmul %75, %29, %cst_40 {dimension_numbers = #tpu.dot_dimension_numbers<[1], [0], [0], [1], [0, 0, 1, 1], [], []>} : vector<16x16xf32>, vector<16x128xf32>, vector<16x128xf32> -> vector<16x128xf32>
    %c0_41 = arith.constant 0 : index
    %c0_42 = arith.constant 0 : index
    %77 = vector.load %arg14[%c0_41, %c0_42] : memref<128x128xf32, #tpu.memory_space<vmem>>, vector<128x128xf32>
    %cst_43 = arith.constant dense<0.000000e+00> : vector<16x128xf32>
    %78 = tpu.matmul %76, %77, %cst_43 {dimension_numbers = #tpu.dot_dimension_numbers<[1], [0], [0], [1], [0, 0, 1, 1], [], []>} : vector<16x128xf32>, vector<128x128xf32>, vector<16x128xf32> -> vector<16x128xf32>
    %c0_44 = arith.constant 0 : index
    %c0_45 = arith.constant 0 : index
    %79 = vector.load %arg15[%c0_44, %c0_45] : memref<1x128xf32, #tpu.memory_space<vmem>>, vector<1x128xf32>
    %80 = vector.broadcast %79 : vector<1x128xf32> to vector<16x128xf32>
    %81 = arith.addf %78, %80 : vector<16x128xf32>
    %cst_46 = arith.constant 0.000000e+00 : f32
    %82 = vector.broadcast %cst_46 : f32 to vector<16x128xf32>
    %83 = arith.maximumf %81, %82 : vector<16x128xf32>
    %c0_47 = arith.constant 0 : index
    %c0_48 = arith.constant 0 : index
    %84 = vector.load %arg18[%c0_47, %c0_48] : memref<128x8xf32, #tpu.memory_space<vmem>>, vector<128x8xf32>
    %cst_49 = arith.constant dense<0.000000e+00> : vector<8x16xf32>
    %85 = tpu.matmul %84, %83, %cst_49 {dimension_numbers = #tpu.dot_dimension_numbers<[0], [1], [1], [0], [0, 1, 1, 0], [], []>} : vector<128x8xf32>, vector<16x128xf32>, vector<8x16xf32> -> vector<8x16xf32>
    %c0_50 = arith.constant 0 : index
    %c0_51 = arith.constant 0 : index
    %86 = vector.load %arg17[%c0_50, %c0_51] : memref<64x8xf32, #tpu.memory_space<vmem>>, vector<64x8xf32>
    %cst_52 = arith.constant dense<0.000000e+00> : vector<64x16xf32>
    %87 = tpu.matmul %86, %85, %cst_52 {dimension_numbers = #tpu.dot_dimension_numbers<[1], [0], [0], [1], [0, 0, 1, 1], [], []>} : vector<64x8xf32>, vector<8x16xf32>, vector<64x16xf32> -> vector<64x16xf32>
    %c0_53 = arith.constant 0 : index
    %c0_54 = arith.constant 0 : index
    %88 = vector.load %arg16[%c0_53, %c0_54] : memref<64x64xf32, #tpu.memory_space<vmem>>, vector<64x64xf32>
    %cst_55 = arith.constant dense<0.000000e+00> : vector<64x16xf32>
    %89 = tpu.matmul %88, %66, %cst_55 {dimension_numbers = #tpu.dot_dimension_numbers<[1], [0], [0], [1], [0, 0, 1, 1], [], []>} : vector<64x64xf32>, vector<64x16xf32>, vector<64x16xf32> -> vector<64x16xf32>
    %90 = tpu.concatenate %83, %83, %83, %83 in 0 : vector<16x128xf32>, vector<16x128xf32>, vector<16x128xf32>, vector<16x128xf32> -> vector<64x128xf32>
    %c0_56 = arith.constant 0 : index
    %c0_57 = arith.constant 0 : index
    %91 = vector.load %arg19[%c0_56, %c0_57] : memref<64x128xf32, #tpu.memory_space<vmem>>, vector<64x128xf32>
    %92 = arith.mulf %90, %91 : vector<64x128xf32>
    %cst_58 = arith.constant dense<0.000000e+00> : vector<64xf32>
    %93 = vector.multi_reduction <add>, %92, %cst_58 [1] : vector<64x128xf32> to vector<64xf32>
    %94 = vector.shape_cast %93 : vector<64xf32> to vector<64x1xf32>
    %95 = arith.addf %89, %87 : vector<64x16xf32>
    %96 = vector.broadcast %94 : vector<64x1xf32> to vector<64x16xf32>
    %97 = arith.addf %95, %96 : vector<64x16xf32>
    %c0_59 = arith.constant 0 : index
    %c0_60 = arith.constant 0 : index
    %98 = vector.load %arg20[%c0_59, %c0_60] : memref<64x1xf32, #tpu.memory_space<vmem>>, vector<64x1xf32>
    %99 = vector.broadcast %98 : vector<64x1xf32> to vector<64x16xf32>
    %100 = arith.addf %97, %99 : vector<64x16xf32>
    %101 = vector.extract_strided_slice %100 {offsets = [0, 0], sizes = [16, 16], strides = [1, 1]} : vector<64x16xf32> to vector<16x16xf32>
    %102 = vector.extract_strided_slice %100 {offsets = [16, 0], sizes = [16, 16], strides = [1, 1]} : vector<64x16xf32> to vector<16x16xf32>
    %103 = arith.addf %101, %102 : vector<16x16xf32>
    %104 = vector.extract_strided_slice %100 {offsets = [32, 0], sizes = [16, 16], strides = [1, 1]} : vector<64x16xf32> to vector<16x16xf32>
    %105 = arith.addf %103, %104 : vector<16x16xf32>
    %106 = vector.extract_strided_slice %100 {offsets = [48, 0], sizes = [16, 16], strides = [1, 1]} : vector<64x16xf32> to vector<16x16xf32>
    %107 = arith.addf %105, %106 : vector<16x16xf32>
    %cst_61 = arith.constant 2.500000e-01 : f32
    %108 = vector.broadcast %cst_61 : f32 to vector<16x16xf32>
    %109 = arith.mulf %107, %108 : vector<16x16xf32>
    %cst_62 = arith.constant dense<0.000000e+00> : vector<16x128xf32>
    %110 = tpu.matmul %109, %83, %cst_62 {dimension_numbers = #tpu.dot_dimension_numbers<[1], [0], [0], [1], [0, 0, 1, 1], [], []>} : vector<16x16xf32>, vector<16x128xf32>, vector<16x128xf32> -> vector<16x128xf32>
    %c0_63 = arith.constant 0 : index
    %c0_64 = arith.constant 0 : index
    %111 = vector.load %arg14[%c0_63, %c0_64] : memref<128x128xf32, #tpu.memory_space<vmem>>, vector<128x128xf32>
    %cst_65 = arith.constant dense<0.000000e+00> : vector<16x128xf32>
    %112 = tpu.matmul %110, %111, %cst_65 {dimension_numbers = #tpu.dot_dimension_numbers<[1], [0], [0], [1], [0, 0, 1, 1], [], []>} : vector<16x128xf32>, vector<128x128xf32>, vector<16x128xf32> -> vector<16x128xf32>
    %c0_66 = arith.constant 0 : index
    %c0_67 = arith.constant 0 : index
    %113 = vector.load %arg15[%c0_66, %c0_67] : memref<1x128xf32, #tpu.memory_space<vmem>>, vector<1x128xf32>
    %114 = vector.broadcast %113 : vector<1x128xf32> to vector<16x128xf32>
    %115 = arith.addf %112, %114 : vector<16x128xf32>
    %cst_68 = arith.constant 0.000000e+00 : f32
    %116 = vector.broadcast %cst_68 : f32 to vector<16x128xf32>
    %117 = arith.maximumf %115, %116 : vector<16x128xf32>
    %118 = tpu.concatenate %29, %83, %117 in 1 : vector<16x128xf32>, vector<16x128xf32>, vector<16x128xf32> -> vector<16x384xf32>
    %c0_69 = arith.constant 0 : index
    %c0_70 = arith.constant 0 : index
    %119 = vector.load %arg21[%c0_69, %c0_70] : memref<384x128xf32, #tpu.memory_space<vmem>>, vector<384x128xf32>
    %cst_71 = arith.constant dense<0.000000e+00> : vector<16x128xf32>
    %120 = tpu.matmul %118, %119, %cst_71 {dimension_numbers = #tpu.dot_dimension_numbers<[1], [0], [0], [1], [0, 0, 1, 1], [], []>} : vector<16x384xf32>, vector<384x128xf32>, vector<16x128xf32> -> vector<16x128xf32>
    %c0_72 = arith.constant 0 : index
    %c0_73 = arith.constant 0 : index
    %121 = vector.load %arg22[%c0_72, %c0_73] : memref<1x128xf32, #tpu.memory_space<vmem>>, vector<1x128xf32>
    %122 = vector.broadcast %121 : vector<1x128xf32> to vector<16x128xf32>
    %123 = arith.addf %120, %122 : vector<16x128xf32>
    %cst_74 = arith.constant 0.000000e+00 : f32
    %124 = vector.broadcast %cst_74 : f32 to vector<16x128xf32>
    %125 = arith.maximumf %123, %124 : vector<16x128xf32>
    %c0_75 = arith.constant 0 : index
    %c0_76 = arith.constant 0 : index
    %c0_77 = arith.constant 0 : index
    %126 = vector.load %arg3[%c0_75, %c0_76, %c0_77] : memref<1x1x16xf32, #tpu.memory_space<vmem>>, vector<1x1x16xf32>
    %127 = vector.shape_cast %126 : vector<1x1x16xf32> to vector<1x16xf32>
    %cst_78 = arith.constant dense<0.000000e+00> : vector<1xf32>
    %128 = vector.multi_reduction <add>, %127, %cst_78 [1] : vector<1x16xf32> to vector<1xf32>
    %129 = vector.shape_cast %128 : vector<1xf32> to vector<1x1xf32>
    %cst_79 = arith.constant 1.000000e+00 : f32
    %130 = vector.broadcast %cst_79 : f32 to vector<1x1xf32>
    %131 = arith.maximumf %129, %130 : vector<1x1xf32>
    %cst_80 = arith.constant dense<0.000000e+00> : vector<128xf32>
    %132 = vector.multi_reduction <add>, %125, %cst_80 [0] : vector<16x128xf32> to vector<128xf32>
    %133 = vector.shape_cast %132 : vector<128xf32> to vector<1x128xf32>
    %134 = tpu.reciprocal %131 {approx = true} : vector<1x1xf32> -> vector<1x1xf32>
    %135 = vector.broadcast %134 : vector<1x1xf32> to vector<1x128xf32>
    %136 = arith.mulf %133, %135 : vector<1x128xf32>
    %c0_81 = arith.constant 0 : index
    %c0_82 = arith.constant 0 : index
    %137 = vector.load %arg23[%c0_81, %c0_82] : memref<128x128xf32, #tpu.memory_space<vmem>>, vector<128x128xf32>
    %cst_83 = arith.constant dense<0.000000e+00> : vector<1x128xf32>
    %138 = tpu.matmul %136, %137, %cst_83 {dimension_numbers = #tpu.dot_dimension_numbers<[1], [0], [0], [1], [0, 0, 1, 1], [], []>} : vector<1x128xf32>, vector<128x128xf32>, vector<1x128xf32> -> vector<1x128xf32>
    %c0_84 = arith.constant 0 : index
    %c0_85 = arith.constant 0 : index
    %139 = vector.load %arg24[%c0_84, %c0_85] : memref<1x128xf32, #tpu.memory_space<vmem>>, vector<1x128xf32>
    %140 = arith.addf %138, %139 : vector<1x128xf32>
    %c0_86 = arith.constant 0 : index
    %c0_87 = arith.constant 0 : index
    %c0_88 = arith.constant 0 : index
    %141 = vector.load %arg25[%c0_86, %c0_87, %c0_88] : memref<1x1x128xf32, #tpu.memory_space<vmem>>, vector<1x1x128xf32>
    %142 = vector.shape_cast %141 : vector<1x1x128xf32> to vector<1x128xf32>
    %143 = vector.shape_cast %140 : vector<1x128xf32> to vector<1x1x128xf32>
    tpu.vector_store %arg25[%c0_86, %c0_87, %c0_88], %143 {strides = array<i32>} : memref<1x1x128xf32, #tpu.memory_space<vmem>>, vector<1x1x128xf32>,
    return
  }
  func.func @transform_0(%arg0: i32) -> (i32, i32, i32) {
    %c0_i32 = arith.constant 0 : i32
    %c0_i32_0 = arith.constant 0 : i32
    %c0_i32_1 = arith.constant 0 : i32
    return %arg0, %c0_i32, %c0_i32_0 : i32, i32, i32
  }
  func.func @transform_1(%arg0: i32) -> (i32, i32, i32) {
    %c0_i32 = arith.constant 0 : i32
    %c0_i32_0 = arith.constant 0 : i32
    %c0_i32_1 = arith.constant 0 : i32
    return %arg0, %c0_i32, %c0_i32_0 : i32, i32, i32
  }
  func.func @transform_2(%arg0: i32) -> (i32, i32, i32) {
    %c0_i32 = arith.constant 0 : i32
    %c0_i32_0 = arith.constant 0 : i32
    %c0_i32_1 = arith.constant 0 : i32
    return %arg0, %c0_i32, %c0_i32_0 : i32, i32, i32
  }
  func.func @transform_3(%arg0: i32) -> (i32, i32, i32) {
    %c0_i32 = arith.constant 0 : i32
    %c0_i32_0 = arith.constant 0 : i32
    %c0_i32_1 = arith.constant 0 : i32
    return %arg0, %c0_i32, %c0_i32_0 : i32, i32, i32
  }
  func.func @transform_4(%arg0: i32) -> (i32, i32) {
    %c0_i32 = arith.constant 0 : i32
    %c0_i32_0 = arith.constant 0 : i32
    %c0_i32_1 = arith.constant 0 : i32
    return %c0_i32, %c0_i32_0 : i32, i32
  }
  func.func @transform_5(%arg0: i32) -> (i32, i32) {
    %c0_i32 = arith.constant 0 : i32
    %c0_i32_0 = arith.constant 0 : i32
    %c0_i32_1 = arith.constant 0 : i32
    return %c0_i32, %c0_i32_0 : i32, i32
  }
  func.func @transform_6(%arg0: i32) -> (i32, i32) {
    %c0_i32 = arith.constant 0 : i32
    %c0_i32_0 = arith.constant 0 : i32
    %c0_i32_1 = arith.constant 0 : i32
    return %c0_i32, %c0_i32_0 : i32, i32
  }
  func.func @transform_7(%arg0: i32) -> (i32, i32) {
    %c0_i32 = arith.constant 0 : i32
    %c0_i32_0 = arith.constant 0 : i32
    %c0_i32_1 = arith.constant 0 : i32
    return %c0_i32, %c0_i32_0 : i32, i32
  }
  func.func @transform_8(%arg0: i32) -> (i32, i32) {
    %c0_i32 = arith.constant 0 : i32
    %c0_i32_0 = arith.constant 0 : i32
    %c0_i32_1 = arith.constant 0 : i32
    return %c0_i32, %c0_i32_0 : i32, i32
  }
  func.func @transform_9(%arg0: i32) -> (i32, i32) {
    %c0_i32 = arith.constant 0 : i32
    %c0_i32_0 = arith.constant 0 : i32
    %c0_i32_1 = arith.constant 0 : i32
    return %c0_i32, %c0_i32_0 : i32, i32
  }
  func.func @transform_10(%arg0: i32) -> (i32, i32) {
    %c0_i32 = arith.constant 0 : i32
    %c0_i32_0 = arith.constant 0 : i32
    %c0_i32_1 = arith.constant 0 : i32
    return %c0_i32, %c0_i32_0 : i32, i32
  }
  func.func @transform_11(%arg0: i32) -> (i32, i32) {
    %c0_i32 = arith.constant 0 : i32
    %c0_i32_0 = arith.constant 0 : i32
    %c0_i32_1 = arith.constant 0 : i32
    return %c0_i32, %c0_i32_0 : i32, i32
  }
  func.func @transform_12(%arg0: i32) -> (i32, i32) {
    %c0_i32 = arith.constant 0 : i32
    %c0_i32_0 = arith.constant 0 : i32
    %c0_i32_1 = arith.constant 0 : i32
    return %c0_i32, %c0_i32_0 : i32, i32
  }
  func.func @transform_13(%arg0: i32) -> (i32, i32) {
    %c0_i32 = arith.constant 0 : i32
    %c0_i32_0 = arith.constant 0 : i32
    %c0_i32_1 = arith.constant 0 : i32
    return %c0_i32, %c0_i32_0 : i32, i32
  }
  func.func @transform_14(%arg0: i32) -> (i32, i32) {
    %c0_i32 = arith.constant 0 : i32
    %c0_i32_0 = arith.constant 0 : i32
    %c0_i32_1 = arith.constant 0 : i32
    return %c0_i32, %c0_i32_0 : i32, i32
  }
  func.func @transform_15(%arg0: i32) -> (i32, i32) {
    %c0_i32 = arith.constant 0 : i32
    %c0_i32_0 = arith.constant 0 : i32
    %c0_i32_1 = arith.constant 0 : i32
    return %c0_i32, %c0_i32_0 : i32, i32
  }
  func.func @transform_16(%arg0: i32) -> (i32, i32) {
    %c0_i32 = arith.constant 0 : i32
    %c0_i32_0 = arith.constant 0 : i32
    %c0_i32_1 = arith.constant 0 : i32
    return %c0_i32, %c0_i32_0 : i32, i32
  }
  func.func @transform_17(%arg0: i32) -> (i32, i32) {
    %c0_i32 = arith.constant 0 : i32
    %c0_i32_0 = arith.constant 0 : i32
    %c0_i32_1 = arith.constant 0 : i32
    return %c0_i32, %c0_i32_0 : i32, i32
  }
  func.func @transform_18(%arg0: i32) -> (i32, i32) {
    %c0_i32 = arith.constant 0 : i32
    %c0_i32_0 = arith.constant 0 : i32
    %c0_i32_1 = arith.constant 0 : i32
    return %c0_i32, %c0_i32_0 : i32, i32
  }
  func.func @transform_19(%arg0: i32) -> (i32, i32) {
    %c0_i32 = arith.constant 0 : i32
    %c0_i32_0 = arith.constant 0 : i32
    %c0_i32_1 = arith.constant 0 : i32
    return %c0_i32, %c0_i32_0 : i32, i32
  }
  func.func @transform_20(%arg0: i32) -> (i32, i32) {
    %c0_i32 = arith.constant 0 : i32
    %c0_i32_0 = arith.constant 0 : i32
    %c0_i32_1 = arith.constant 0 : i32
    return %c0_i32, %c0_i32_0 : i32, i32
  }
  func.func @transform_21(%arg0: i32) -> (i32, i32) {
    %c0_i32 = arith.constant 0 : i32
    %c0_i32_0 = arith.constant 0 : i32
    %c0_i32_1 = arith.constant 0 : i32
    return %c0_i32, %c0_i32_0 : i32, i32
  }
  func.func @transform_22(%arg0: i32) -> (i32, i32) {
    %c0_i32 = arith.constant 0 : i32
    %c0_i32_0 = arith.constant 0 : i32
    %c0_i32_1 = arith.constant 0 : i32
    return %c0_i32, %c0_i32_0 : i32, i32
  }
  func.func @transform_23(%arg0: i32) -> (i32, i32) {
    %c0_i32 = arith.constant 0 : i32
    %c0_i32_0 = arith.constant 0 : i32
    %c0_i32_1 = arith.constant 0 : i32
    return %c0_i32, %c0_i32_0 : i32, i32
  }
  func.func @transform_24(%arg0: i32) -> (i32, i32, i32) {
    %c0_i32 = arith.constant 0 : i32
    %c0_i32_0 = arith.constant 0 : i32
    %c0_i32_1 = arith.constant 0 : i32
    return %arg0, %c0_i32, %c0_i32_0 : i32, i32, i32
  }
}

</mosaic_0001>

<llo_original>
// kernel: tpu_custom_call.1
$region0: #{tpu_custom_call.1}
  #allocation0 [shape = 'u32[]', space=smem, size = 0x4, offset = 0x4, fixed_abs, tag = 'smem constant byte address 0x4 - core index']
  #allocation1 [shape = 'u32[72,128]{1,0:T(1,128)}', space=vmem, size = 0x9000, scoped, tag = 'internal scratch']
  %s0 = inlined_call_operand.hbm [shape: f32[2,16,32], index: 0, kind: input, shape index: {}]
  %s1 = inlined_call_operand.vmem [shape: f32[2,1,16], index: 1, kind: input, shape index: {}]
  %s2 = inlined_call_operand.vmem [shape: f32[2,1,16], index: 2, kind: input, shape index: {}]
  %s3 = inlined_call_operand.vmem [shape: f32[2,64,16], index: 3, kind: input, shape index: {}]
  %s4 = inlined_call_operand.vmem [shape: f32[1,32], index: 4, kind: input, shape index: {}]
  %s5 = inlined_call_operand.vmem [shape: f32[1,32], index: 5, kind: input, shape index: {}]
  %s6 = inlined_call_operand.hbm [shape: f32[32,128], index: 6, kind: input, shape index: {}]
  %s7 = inlined_call_operand.vmem [shape: f32[1,128], index: 7, kind: input, shape index: {}]
  %s8 = inlined_call_operand.vmem [shape: f32[128,128], index: 8, kind: input, shape index: {}]
  %s9 = inlined_call_operand.vmem [shape: f32[1,128], index: 9, kind: input, shape index: {}]
  %s10 = inlined_call_operand.vmem [shape: f32[128,128], index: 10, kind: input, shape index: {}]
  %s11 = inlined_call_operand.vmem [shape: f32[1,128], index: 11, kind: input, shape index: {}]
  %s12 = inlined_call_operand.vmem [shape: f32[64,128], index: 12, kind: input, shape index: {}]
  %s13 = inlined_call_operand.hbm [shape: f32[128,128], index: 13, kind: input, shape index: {}]
  %s14 = inlined_call_operand.vmem [shape: f32[1,128], index: 14, kind: input, shape index: {}]
  %s15 = inlined_call_operand.vmem [shape: f32[64,64], index: 15, kind: input, shape index: {}]
  %s16 = inlined_call_operand.vmem [shape: f32[64,8], index: 16, kind: input, shape index: {}]
  %s17 = inlined_call_operand.vmem [shape: f32[128,8], index: 17, kind: input, shape index: {}]
  %s18 = inlined_call_operand.hbm [shape: f32[64,128], index: 18, kind: input, shape index: {}]
  %s19 = inlined_call_operand.vmem [shape: f32[64,1], index: 19, kind: input, shape index: {}]
  %s20 = inlined_call_operand.hbm [shape: f32[384,128], index: 20, kind: input, shape index: {}]
  %s21 = inlined_call_operand.vmem [shape: f32[1,128], index: 21, kind: input, shape index: {}]
  %s22 = inlined_call_operand.hbm [shape: f32[128,128], index: 22, kind: input, shape index: {}]
  %s23 = inlined_call_operand.vmem [shape: f32[1,128], index: 23, kind: input, shape index: {}]
  %s24 = inlined_call_operand.hbm [shape: f32[2,1,128], index: 24, kind: output, shape index: {}]
  %s25 = sld [smem:[#allocation0]]
  $region153: #{tpu_custom_call.1} parent=0
    _
  %s27 = ssub.s32 1, %s25
  %s28 = scalar_select 0, %s27, %s25
  $region1: #{tpu_custom_call.1} parent=0
    #allocation2 [shape = 'u8[16384]{0}', space=vmem, size = 0x4000, scoped, tag = 'input window, operand 0']
    #allocation3 [shape = 's32[2]{0}', space=sflag, size = 0x8, scoped, tag = 'scoped memory for tpu_custom_call.1']
    #allocation4 [shape = 's32[2]{0}', space=sflag, size = 0x8, scoped, tag = 'scoped memory for tpu_custom_call.1']
    #allocation5 [shape = 'u8[16384]{0}', space=vmem, size = 0x4000, scoped, tag = 'input window, operand 6, single buffered']
    #allocation6 [shape = 's32[1]{0}', space=sflag, size = 0x4, scoped, tag = 'scoped memory for tpu_custom_call.1']
    #allocation7 [shape = 'u8[65536]{0}', space=vmem, size = 0x10000, scoped, tag = 'input window, operand 13, single buffered']
    #allocation8 [shape = 'u8[32768]{0}', space=vmem, size = 0x8000, scoped, tag = 'input window, operand 18, single buffered']
    #allocation9 [shape = 's32[1]{0}', space=sflag, size = 0x4, scoped, tag = 'scoped memory for tpu_custom_call.1']
    #allocation10 [shape = 'u8[196608]{0}', space=vmem, size = 0x30000, scoped, tag = 'input window, operand 20, single buffered']
    #allocation11 [shape = 'u8[65536]{0}', space=vmem, size = 0x10000, scoped, tag = 'input window, operand 22, single buffered']
    #allocation12 [shape = 's32[1]{0}', space=sflag, size = 0x4, scoped, tag = 'scoped memory for tpu_custom_call.1']
    #allocation13 [shape = 'u8[1024]{0}', space=vmem, size = 0x400, scoped, tag = 'output window, operand 0']
    %29 = vsyncpa [#allocation3], 0
    %s30 = scalar_lea.sflag [#allocation3], 1
    %31 = vsyncpa %s30, 0
    %32 = vsyncpa [#allocation6], 0
    %33 = vsyncpa [#allocation9], 0
    %34 = vsyncpa [#allocation12], 0
    %35 = vsyncpa [#allocation4], 0
    %s36 = scalar_lea.sflag [#allocation4], 1
    %37 = vsyncpa %s36, 0
    loop: start=0, step=1, limit=4
    $region2: #{tpu_custom_call.1} parent=1 // loop_pre_header
      _
    $region3: #{tpu_custom_call.1} parent=1 // loop_header
      %s39 = sphi 0, %s43
      %p40 = scmp.ge.s32.totalorder %s39, 4
      %s49 = sphi 0, %s51
      %s52 = sphi 0, %s49
      %s53 = sphi 0, %s52
      %s69 = sphi 0, %s53
      %s75 = sphi 0, %s77
      %s78 = sphi 0, %s75
      %s79 = sphi 0, %s78
      %s95 = sphi 0, %s79
      %s101 = sphi 0, %s103
      %s104 = sphi 0, %s101
      %s105 = sphi 0, %s104
      %s121 = sphi 0, %s105
      %s127 = sphi 0, %s129
      %s130 = sphi 0, %s127
      %s131 = sphi 0, %s130
      %s147 = sphi 0, %s131
      %s151 = sphi 0, %s151
      %s153 = sphi 0, %s151
      %s154 = sphi 0, %s153
      %s168 = sphi 0, %s154
      %s172 = sphi 0, %s172
      %s174 = sphi 0, %s172
      %s175 = sphi 0, %s174
      %s189 = sphi 0, %s175
      %s193 = sphi 0, %s193
      %s195 = sphi 0, %s193
      %s196 = sphi 0, %s195
      %s210 = sphi 0, %s196
      %s214 = sphi 0, %s214
      %s216 = sphi 0, %s214
      %s217 = sphi 0, %s216
      %s231 = sphi 0, %s217
      %s235 = sphi 0, %s235
      %s237 = sphi 0, %s235
      %s238 = sphi 0, %s237
      %s252 = sphi 0, %s238
      %s256 = sphi 0, %s256
      %s258 = sphi 0, %s256
      %s259 = sphi 0, %s258
      %s273 = sphi 0, %s259
      %s277 = sphi 0, %s277
      %s279 = sphi 0, %s277
      %s280 = sphi 0, %s279
      %s294 = sphi 0, %s280
      %s298 = sphi 0, %s298
      %s300 = sphi 0, %s298
      %s301 = sphi 0, %s300
      %s315 = sphi 0, %s301
      %s319 = sphi 0, %s319
      %s321 = sphi 0, %s319
      %s322 = sphi 0, %s321
      %s336 = sphi 0, %s322
      %s340 = sphi 0, %s340
      %s342 = sphi 0, %s340
      %s343 = sphi 0, %s342
      %s357 = sphi 0, %s343
      %s361 = sphi 0, %s361
      %s363 = sphi 0, %s361
      %s364 = sphi 0, %s363
      %s378 = sphi 0, %s364
      %s382 = sphi 0, %s382
      %s384 = sphi 0, %s382
      %s385 = sphi 0, %s384
      %s399 = sphi 0, %s385
      %s403 = sphi 0, %s403
      %s405 = sphi 0, %s403
      %s406 = sphi 0, %s405
      %s420 = sphi 0, %s406
      %s424 = sphi 0, %s424
      %s426 = sphi 0, %s424
      %s427 = sphi 0, %s426
      %s441 = sphi 0, %s427
      %s445 = sphi 0, %s445
      %s447 = sphi 0, %s445
      %s448 = sphi 0, %s447
      %s462 = sphi 0, %s448
      %s466 = sphi 0, %s466
      %s468 = sphi 0, %s466
      %s469 = sphi 0, %s468
      %s483 = sphi 0, %s469
      %s487 = sphi 0, %s487
      %s489 = sphi 0, %s487
      %s490 = sphi 0, %s489
      %s504 = sphi 0, %s490
      %s508 = sphi 0, %s508
      %s510 = sphi 0, %s508
      %s511 = sphi 0, %s510
      %s525 = sphi 0, %s511
      %s529 = sphi 0, %s529
      %s531 = sphi 0, %s529
      %s532 = sphi 0, %s531
      %s546 = sphi 0, %s532
      %s550 = sphi 0, %s550
      %s552 = sphi 0, %s550
      %s553 = sphi 0, %s552
      %s567 = sphi 0, %s553
      %s573 = sphi 0, %s575
      %s576 = sphi 0, %s573
      %s577 = sphi 0, %s576
      %s593 = sphi 0, %s577
    $region4: #{tpu_custom_call.1} parent=1 // loop_header_branch
      %42 = sbr.rel (%p40) target = $region8
    $region5: #{tpu_custom_call.1} parent=1 // loop_body
      %s44 = ssub.s32 %s39, 1
      %s45 = ssub.s32 %s39, 2
      %s46 = sadd.s32 %s39, 1
      %s47 = ssub.s32 %s39, %s46
      %p48 = scmp.eq.s32.totalorder %s47, 0
      %s50 = sadd.s32 %s49, 1
      %s51 = scalar_select %p48, %s49, %s50
      %p54 = pneg %p48
      %p55 = scmp.eq.s32.totalorder %s39, 1
      %p56 = por %p54, %p55
      %p57 = scmp.ne.s32.totalorder %s49, %s52
      %p58 = scmp.eq.s32.totalorder %s39, 0
      %p59 = por %p57, %p58
      %p60 = scmp.ne.s32.totalorder %s49, %s52
      %p61 = scmp.eq.s32.totalorder %s44, 1
      %p62 = por %p60, %p61
      %p63 = scmp.ne.s32.totalorder %s52, %s53
      %p64 = scmp.eq.s32.totalorder %s44, 0
      %p65 = por %p63, %p64
      %p66 = scmp.ne.s32.totalorder %s52, %s53
      %p67 = scmp.eq.s32.totalorder %s45, 1
      %p68 = por %p66, %p67
      %p70 = scmp.ne.s32.totalorder %s53, %s69
      %p71 = scmp.eq.s32.totalorder %s45, 0
      %p72 = por %p70, %p71
      %s73 = ssub.s32 %s39, %s46
      %p74 = scmp.eq.s32.totalorder %s73, 0
      %s76 = sadd.s32 %s75, 1
      %s77 = scalar_select %p74, %s75, %s76
      %p80 = pneg %p74
      %p81 = scmp.eq.s32.totalorder %s39, 1
      %p82 = por %p80, %p81
      %p83 = scmp.ne.s32.totalorder %s75, %s78
      %p84 = scmp.eq.s32.totalorder %s39, 0
      %p85 = por %p83, %p84
      %p86 = scmp.ne.s32.totalorder %s75, %s78
      %p87 = scmp.eq.s32.totalorder %s44, 1
      %p88 = por %p86, %p87
      %p89 = scmp.ne.s32.totalorder %s78, %s79
      %p90 = scmp.eq.s32.totalorder %s44, 0
      %p91 = por %p89, %p90
      %p92 = scmp.ne.s32.totalorder %s78, %s79
      %p93 = scmp.eq.s32.totalorder %s45, 1
      %p94 = por %p92, %p93
      %p96 = scmp.ne.s32.totalorder %s79, %s95
      %p97 = scmp.eq.s32.totalorder %s45, 0
      %p98 = por %p96, %p97
      %s99 = ssub.s32 %s39, %s46
      %p100 = scmp.eq.s32.totalorder %s99, 0
      %s102 = sadd.s32 %s101, 1
      %s103 = scalar_select %p100, %s101, %s102
      %p106 = pneg %p100
      %p107 = scmp.eq.s32.totalorder %s39, 1
      %p108 = por %p106, %p107
      %p109 = scmp.ne.s32.totalorder %s101, %s104
      %p110 = scmp.eq.s32.totalorder %s39, 0
      %p111 = por %p109, %p110
      %p112 = scmp.ne.s32.totalorder %s101, %s104
      %p113 = scmp.eq.s32.totalorder %s44, 1
      %p114 = por %p112, %p113
      %p115 = scmp.ne.s32.totalorder %s104, %s105
      %p116 = scmp.eq.s32.totalorder %s44, 0
      %p117 = por %p115, %p116
      %p118 = scmp.ne.s32.totalorder %s104, %s105
      %p119 = scmp.eq.s32.totalorder %s45, 1
      %p120 = por %p118, %p119
      %p122 = scmp.ne.s32.totalorder %s105, %s121
      %p123 = scmp.eq.s32.totalorder %s45, 0
      %p124 = por %p122, %p123
      %s125 = ssub.s32 %s39, %s46
      %p126 = scmp.eq.s32.totalorder %s125, 0
      %s128 = sadd.s32 %s127, 1
      %s129 = scalar_select %p126, %s127, %s128
      %p132 = pneg %p126
      %p133 = scmp.eq.s32.totalorder %s39, 1
      %p134 = por %p132, %p133
      %p135 = scmp.ne.s32.totalorder %s127, %s130
      %p136 = scmp.eq.s32.totalorder %s39, 0
      %p137 = por %p135, %p136
      %p138 = scmp.ne.s32.totalorder %s127, %s130
      %p139 = scmp.eq.s32.totalorder %s44, 1
      %p140 = por %p138, %p139
      %p141 = scmp.ne.s32.totalorder %s130, %s131
      %p142 = scmp.eq.s32.totalorder %s44, 0
      %p143 = por %p141, %p142
      %p144 = scmp.ne.s32.totalorder %s130, %s131
      %p145 = scmp.eq.s32.totalorder %s45, 1
      %p146 = por %p144, %p145
      %p148 = scmp.ne.s32.totalorder %s131, %s147
      %p149 = scmp.eq.s32.totalorder %s45, 0
      %p150 = por %p148, %p149
      %s152 = sadd.s32 %s151, 1
      %p155 = scmp.eq.s32.totalorder %s39, 1
      %p156 = scmp.ne.s32.totalorder %s151, %s153
      %p157 = scmp.eq.s32.totalorder %s39, 0
      %p158 = por %p156, %p157
      %p159 = scmp.ne.s32.totalorder %s151, %s153
      %p160 = scmp.eq.s32.totalorder %s44, 1
      %p161 = por %p159, %p160
      %p162 = scmp.ne.s32.totalorder %s153, %s154
      %p163 = scmp.eq.s32.totalorder %s44, 0
      %p164 = por %p162, %p163
      %p165 = scmp.ne.s32.totalorder %s153, %s154
      %p166 = scmp.eq.s32.totalorder %s45, 1
      %p167 = por %p165, %p166
      %p169 = scmp.ne.s32.totalorder %s154, %s168
      %p170 = scmp.eq.s32.totalorder %s45, 0
      %p171 = por %p169, %p170
      %s173 = sadd.s32 %s172, 1
      %p176 = scmp.eq.s32.totalorder %s39, 1
      %p177 = scmp.ne.s32.totalorder %s172, %s174
      %p178 = scmp.eq.s32.totalorder %s39, 0
      %p179 = por %p177, %p178
      %p180 = scmp.ne.s32.totalorder %s172, %s174
      %p181 = scmp.eq.s32.totalorder %s44, 1
      %p182 = por %p180, %p181
      %p183 = scmp.ne.s32.totalorder %s174, %s175
      %p184 = scmp.eq.s32.totalorder %s44, 0
      %p185 = por %p183, %p184
      %p186 = scmp.ne.s32.totalorder %s174, %s175
      %p187 = scmp.eq.s32.totalorder %s45, 1
      %p188 = por %p186, %p187
      %p190 = scmp.ne.s32.totalorder %s175, %s189
      %p191 = scmp.eq.s32.totalorder %s45, 0
      %p192 = por %p190, %p191
      %s194 = sadd.s32 %s193, 1
      %p197 = scmp.eq.s32.totalorder %s39, 1
      %p198 = scmp.ne.s32.totalorder %s193, %s195
      %p199 = scmp.eq.s32.totalorder %s39, 0
      %p200 = por %p198, %p199
      %p201 = scmp.ne.s32.totalorder %s193, %s195
      %p202 = scmp.eq.s32.totalorder %s44, 1
      %p203 = por %p201, %p202
      %p204 = scmp.ne.s32.totalorder %s195, %s196
      %p205 = scmp.eq.s32.totalorder %s44, 0
      %p206 = por %p204, %p205
      %p207 = scmp.ne.s32.totalorder %s195, %s196
      %p208 = scmp.eq.s32.totalorder %s45, 1
      %p209 = por %p207, %p208
      %p211 = scmp.ne.s32.totalorder %s196, %s210
      %p212 = scmp.eq.s32.totalorder %s45, 0
      %p213 = por %p211, %p212
      %s215 = sadd.s32 %s214, 1
      %p218 = scmp.eq.s32.totalorder %s39, 1
      %p219 = scmp.ne.s32.totalorder %s214, %s216
      %p220 = scmp.eq.s32.totalorder %s39, 0
      %p221 = por %p219, %p220
      %p222 = scmp.ne.s32.totalorder %s214, %s216
      %p223 = scmp.eq.s32.totalorder %s44, 1
      %p224 = por %p222, %p223
      %p225 = scmp.ne.s32.totalorder %s216, %s217
      %p226 = scmp.eq.s32.totalorder %s44, 0
      %p227 = por %p225, %p226
      %p228 = scmp.ne.s32.totalorder %s216, %s217
      %p229 = scmp.eq.s32.totalorder %s45, 1
      %p230 = por %p228, %p229
      %p232 = scmp.ne.s32.totalorder %s217, %s231
      %p233 = scmp.eq.s32.totalorder %s45, 0
      %p234 = por %p232, %p233
      %s236 = sadd.s32 %s235, 1
      %p239 = scmp.eq.s32.totalorder %s39, 1
      %p240 = scmp.ne.s32.totalorder %s235, %s237
      %p241 = scmp.eq.s32.totalorder %s39, 0
      %p242 = por %p240, %p241
      %p243 = scmp.ne.s32.totalorder %s235, %s237
      %p244 = scmp.eq.s32.totalorder %s44, 1
      %p245 = por %p243, %p244
      %p246 = scmp.ne.s32.totalorder %s237, %s238
      %p247 = scmp.eq.s32.totalorder %s44, 0
      %p248 = por %p246, %p247
      %p249 = scmp.ne.s32.totalorder %s237, %s238
      %p250 = scmp.eq.s32.totalorder %s45, 1
      %p251 = por %p249, %p250
      %p253 = scmp.ne.s32.totalorder %s238, %s252
      %p254 = scmp.eq.s32.totalorder %s45, 0
      %p255 = por %p253, %p254
      %s257 = sadd.s32 %s256, 1
      %p260 = scmp.eq.s32.totalorder %s39, 1
      %p261 = scmp.ne.s32.totalorder %s256, %s258
      %p262 = scmp.eq.s32.totalorder %s39, 0
      %p263 = por %p261, %p262
      %p264 = scmp.ne.s32.totalorder %s256, %s258
      %p265 = scmp.eq.s32.totalorder %s44, 1
      %p266 = por %p264, %p265
      %p267 = scmp.ne.s32.totalorder %s258, %s259
      %p268 = scmp.eq.s32.totalorder %s44, 0
      %p269 = por %p267, %p268
      %p270 = scmp.ne.s32.totalorder %s258, %s259
      %p271 = scmp.eq.s32.totalorder %s45, 1
      %p272 = por %p270, %p271
      %p274 = scmp.ne.s32.totalorder %s259, %s273
      %p275 = scmp.eq.s32.totalorder %s45, 0
      %p276 = por %p274, %p275
      %s278 = sadd.s32 %s277, 1
      %p281 = scmp.eq.s32.totalorder %s39, 1
      %p282 = scmp.ne.s32.totalorder %s277, %s279
      %p283 = scmp.eq.s32.totalorder %s39, 0
      %p284 = por %p282, %p283
      %p285 = scmp.ne.s32.totalorder %s277, %s279
      %p286 = scmp.eq.s32.totalorder %s44, 1
      %p287 = por %p285, %p286
      %p288 = scmp.ne.s32.totalorder %s279, %s280
      %p289 = scmp.eq.s32.totalorder %s44, 0
      %p290 = por %p288, %p289
      %p291 = scmp.ne.s32.totalorder %s279, %s280
      %p292 = scmp.eq.s32.totalorder %s45, 1
      %p293 = por %p291, %p292
      %p295 = scmp.ne.s32.totalorder %s280, %s294
      %p296 = scmp.eq.s32.totalorder %s45, 0
      %p297 = por %p295, %p296
      %s299 = sadd.s32 %s298, 1
      %p302 = scmp.eq.s32.totalorder %s39, 1
      %p303 = scmp.ne.s32.totalorder %s298, %s300
      %p304 = scmp.eq.s32.totalorder %s39, 0
      %p305 = por %p303, %p304
      %p306 = scmp.ne.s32.totalorder %s298, %s300
      %p307 = scmp.eq.s32.totalorder %s44, 1
      %p308 = por %p306, %p307
      %p309 = scmp.ne.s32.totalorder %s300, %s301
      %p310 = scmp.eq.s32.totalorder %s44, 0
      %p311 = por %p309, %p310
      %p312 = scmp.ne.s32.totalorder %s300, %s301
      %p313 = scmp.eq.s32.totalorder %s45, 1
      %p314 = por %p312, %p313
      %p316 = scmp.ne.s32.totalorder %s301, %s315
      %p317 = scmp.eq.s32.totalorder %s45, 0
      %p318 = por %p316, %p317
      %s320 = sadd.s32 %s319, 1
      %p323 = scmp.eq.s32.totalorder %s39, 1
      %p324 = scmp.ne.s32.totalorder %s319, %s321
      %p325 = scmp.eq.s32.totalorder %s39, 0
      %p326 = por %p324, %p325
      %p327 = scmp.ne.s32.totalorder %s319, %s321
      %p328 = scmp.eq.s32.totalorder %s44, 1
      %p329 = por %p327, %p328
      %p330 = scmp.ne.s32.totalorder %s321, %s322
      %p331 = scmp.eq.s32.totalorder %s44, 0
      %p332 = por %p330, %p331
      %p333 = scmp.ne.s32.totalorder %s321, %s322
      %p334 = scmp.eq.s32.totalorder %s45, 1
      %p335 = por %p333, %p334
      %p337 = scmp.ne.s32.totalorder %s322, %s336
      %p338 = scmp.eq.s32.totalorder %s45, 0
      %p339 = por %p337, %p338
      %s341 = sadd.s32 %s340, 1
      %p344 = scmp.eq.s32.totalorder %s39, 1
      %p345 = scmp.ne.s32.totalorder %s340, %s342
      %p346 = scmp.eq.s32.totalorder %s39, 0
      %p347 = por %p345, %p346
      %p348 = scmp.ne.s32.totalorder %s340, %s342
      %p349 = scmp.eq.s32.totalorder %s44, 1
      %p350 = por %p348, %p349
      %p351 = scmp.ne.s32.totalorder %s342, %s343
      %p352 = scmp.eq.s32.totalorder %s44, 0
      %p353 = por %p351, %p352
      %p354 = scmp.ne.s32.totalorder %s342, %s343
      %p355 = scmp.eq.s32.totalorder %s45, 1
      %p356 = por %p354, %p355
      %p358 = scmp.ne.s32.totalorder %s343, %s357
      %p359 = scmp.eq.s32.totalorder %s45, 0
      %p360 = por %p358, %p359
      %s362 = sadd.s32 %s361, 1
      %p365 = scmp.eq.s32.totalorder %s39, 1
      %p366 = scmp.ne.s32.totalorder %s361, %s363
      %p367 = scmp.eq.s32.totalorder %s39, 0
      %p368 = por %p366, %p367
      %p369 = scmp.ne.s32.totalorder %s361, %s363
      %p370 = scmp.eq.s32.totalorder %s44, 1
      %p371 = por %p369, %p370
      %p372 = scmp.ne.s32.totalorder %s363, %s364
      %p373 = scmp.eq.s32.totalorder %s44, 0
      %p374 = por %p372, %p373
      %p375 = scmp.ne.s32.totalorder %s363, %s364
      %p376 = scmp.eq.s32.totalorder %s45, 1
      %p377 = por %p375, %p376
      %p379 = scmp.ne.s32.totalorder %s364, %s378
      %p380 = scmp.eq.s32.totalorder %s45, 0
      %p381 = por %p379, %p380
      %s383 = sadd.s32 %s382, 1
      %p386 = scmp.eq.s32.totalorder %s39, 1
      %p387 = scmp.ne.s32.totalorder %s382, %s384
      %p388 = scmp.eq.s32.totalorder %s39, 0
      %p389 = por %p387, %p388
      %p390 = scmp.ne.s32.totalorder %s382, %s384
      %p391 = scmp.eq.s32.totalorder %s44, 1
      %p392 = por %p390, %p391
      %p393 = scmp.ne.s32.totalorder %s384, %s385
      %p394 = scmp.eq.s32.totalorder %s44, 0
      %p395 = por %p393, %p394
      %p396 = scmp.ne.s32.totalorder %s384, %s385
      %p397 = scmp.eq.s32.totalorder %s45, 1
      %p398 = por %p396, %p397
      %p400 = scmp.ne.s32.totalorder %s385, %s399
      %p401 = scmp.eq.s32.totalorder %s45, 0
      %p402 = por %p400, %p401
      %s404 = sadd.s32 %s403, 1
      %p407 = scmp.eq.s32.totalorder %s39, 1
      %p408 = scmp.ne.s32.totalorder %s403, %s405
      %p409 = scmp.eq.s32.totalorder %s39, 0
      %p410 = por %p408, %p409
      %p411 = scmp.ne.s32.totalorder %s403, %s405
      %p412 = scmp.eq.s32.totalorder %s44, 1
      %p413 = por %p411, %p412
      %p414 = scmp.ne.s32.totalorder %s405, %s406
      %p415 = scmp.eq.s32.totalorder %s44, 0
      %p416 = por %p414, %p415
      %p417 = scmp.ne.s32.totalorder %s405, %s406
      %p418 = scmp.eq.s32.totalorder %s45, 1
      %p419 = por %p417, %p418
      %p421 = scmp.ne.s32.totalorder %s406, %s420
      %p422 = scmp.eq.s32.totalorder %s45, 0
      %p423 = por %p421, %p422
      %s425 = sadd.s32 %s424, 1
      %p428 = scmp.eq.s32.totalorder %s39, 1
      %p429 = scmp.ne.s32.totalorder %s424, %s426
      %p430 = scmp.eq.s32.totalorder %s39, 0
      %p431 = por %p429, %p430
      %p432 = scmp.ne.s32.totalorder %s424, %s426
      %p433 = scmp.eq.s32.totalorder %s44, 1
      %p434 = por %p432, %p433
      %p435 = scmp.ne.s32.totalorder %s426, %s427
      %p436 = scmp.eq.s32.totalorder %s44, 0
      %p437 = por %p435, %p436
      %p438 = scmp.ne.s32.totalorder %s426, %s427
      %p439 = scmp.eq.s32.totalorder %s45, 1
      %p440 = por %p438, %p439
      %p442 = scmp.ne.s32.totalorder %s427, %s441
      %p443 = scmp.eq.s32.totalorder %s45, 0
      %p444 = por %p442, %p443
      %s446 = sadd.s32 %s445, 1
      %p449 = scmp.eq.s32.totalorder %s39, 1
      %p450 = scmp.ne.s32.totalorder %s445, %s447
      %p451 = scmp.eq.s32.totalorder %s39, 0
      %p452 = por %p450, %p451
      %p453 = scmp.ne.s32.totalorder %s445, %s447
      %p454 = scmp.eq.s32.totalorder %s44, 1
      %p455 = por %p453, %p454
      %p456 = scmp.ne.s32.totalorder %s447, %s448
      %p457 = scmp.eq.s32.totalorder %s44, 0
      %p458 = por %p456, %p457
      %p459 = scmp.ne.s32.totalorder %s447, %s448
      %p460 = scmp.eq.s32.totalorder %s45, 1
      %p461 = por %p459, %p460
      %p463 = scmp.ne.s32.totalorder %s448, %s462
      %p464 = scmp.eq.s32.totalorder %s45, 0
      %p465 = por %p463, %p464
      %s467 = sadd.s32 %s466, 1
      %p470 = scmp.eq.s32.totalorder %s39, 1
      %p471 = scmp.ne.s32.totalorder %s466, %s468
      %p472 = scmp.eq.s32.totalorder %s39, 0
      %p473 = por %p471, %p472
      %p474 = scmp.ne.s32.totalorder %s466, %s468
      %p475 = scmp.eq.s32.totalorder %s44, 1
      %p476 = por %p474, %p475
      %p477 = scmp.ne.s32.totalorder %s468, %s469
      %p478 = scmp.eq.s32.totalorder %s44, 0
      %p479 = por %p477, %p478
      %p480 = scmp.ne.s32.totalorder %s468, %s469
      %p481 = scmp.eq.s32.totalorder %s45, 1
      %p482 = por %p480, %p481
      %p484 = scmp.ne.s32.totalorder %s469, %s483
      %p485 = scmp.eq.s32.totalorder %s45, 0
      %p486 = por %p484, %p485
      %s488 = sadd.s32 %s487, 1
      %p491 = scmp.eq.s32.totalorder %s39, 1
      %p492 = scmp.ne.s32.totalorder %s487, %s489
      %p493 = scmp.eq.s32.totalorder %s39, 0
      %p494 = por %p492, %p493
      %p495 = scmp.ne.s32.totalorder %s487, %s489
      %p496 = scmp.eq.s32.totalorder %s44, 1
      %p497 = por %p495, %p496
      %p498 = scmp.ne.s32.totalorder %s489, %s490
      %p499 = scmp.eq.s32.totalorder %s44, 0
      %p500 = por %p498, %p499
      %p501 = scmp.ne.s32.totalorder %s489, %s490
      %p502 = scmp.eq.s32.totalorder %s45, 1
      %p503 = por %p501, %p502
      %p505 = scmp.ne.s32.totalorder %s490, %s504
      %p506 = scmp.eq.s32.totalorder %s45, 0
      %p507 = por %p505, %p506
      %s509 = sadd.s32 %s508, 1
      %p512 = scmp.eq.s32.totalorder %s39, 1
      %p513 = scmp.ne.s32.totalorder %s508, %s510
      %p514 = scmp.eq.s32.totalorder %s39, 0
      %p515 = por %p513, %p514
      %p516 = scmp.ne.s32.totalorder %s508, %s510
      %p517 = scmp.eq.s32.totalorder %s44, 1
      %p518 = por %p516, %p517
      %p519 = scmp.ne.s32.totalorder %s510, %s511
      %p520 = scmp.eq.s32.totalorder %s44, 0
      %p521 = por %p519, %p520
      %p522 = scmp.ne.s32.totalorder %s510, %s511
      %p523 = scmp.eq.s32.totalorder %s45, 1
      %p524 = por %p522, %p523
      %p526 = scmp.ne.s32.totalorder %s511, %s525
      %p527 = scmp.eq.s32.totalorder %s45, 0
      %p528 = por %p526, %p527
      %s530 = sadd.s32 %s529, 1
      %p533 = scmp.eq.s32.totalorder %s39, 1
      %p534 = scmp.ne.s32.totalorder %s529, %s531
      %p535 = scmp.eq.s32.totalorder %s39, 0
      %p536 = por %p534, %p535
      %p537 = scmp.ne.s32.totalorder %s529, %s531
      %p538 = scmp.eq.s32.totalorder %s44, 1
      %p539 = por %p537, %p538
      %p540 = scmp.ne.s32.totalorder %s531, %s532
      %p541 = scmp.eq.s32.totalorder %s44, 0
      %p542 = por %p540, %p541
      %p543 = scmp.ne.s32.totalorder %s531, %s532
      %p544 = scmp.eq.s32.totalorder %s45, 1
      %p545 = por %p543, %p544
      %p547 = scmp.ne.s32.totalorder %s532, %s546
      %p548 = scmp.eq.s32.totalorder %s45, 0
      %p549 = por %p547, %p548
      %s551 = sadd.s32 %s550, 1
      %p554 = scmp.eq.s32.totalorder %s39, 1
      %p555 = scmp.ne.s32.totalorder %s550, %s552
      %p556 = scmp.eq.s32.totalorder %s39, 0
      %p557 = por %p555, %p556
      %p558 = scmp.ne.s32.totalorder %s550, %s552
      %p559 = scmp.eq.s32.totalorder %s44, 1
      %p560 = por %p558, %p559
      %p561 = scmp.ne.s32.totalorder %s552, %s553
      %p562 = scmp.eq.s32.totalorder %s44, 0
      %p563 = por %p561, %p562
      %p564 = scmp.ne.s32.totalorder %s552, %s553
      %p565 = scmp.eq.s32.totalorder %s45, 1
      %p566 = por %p564, %p565
      %p568 = scmp.ne.s32.totalorder %s553, %s567
      %p569 = scmp.eq.s32.totalorder %s45, 0
      %p570 = por %p568, %p569
      %s571 = ssub.s32 %s39, %s46
      %p572 = scmp.eq.s32.totalorder %s571, 0
      %s574 = sadd.s32 %s573, 1
      %s575 = scalar_select %p572, %s573, %s574
      %p578 = pneg %p572
      %p579 = scmp.eq.s32.totalorder %s39, 1
      %p580 = por %p578, %p579
      %p581 = scmp.ne.s32.totalorder %s573, %s576
      %p582 = scmp.eq.s32.totalorder %s39, 0
      %p583 = por %p581, %p582
      %p584 = scmp.ne.s32.totalorder %s573, %s576
      %p585 = scmp.eq.s32.totalorder %s44, 1
      %p586 = por %p584, %p585
      %p587 = scmp.ne.s32.totalorder %s576, %s577
      %p588 = scmp.eq.s32.totalorder %s44, 0
      %p589 = por %p587, %p588
      %p590 = scmp.ne.s32.totalorder %s576, %s577
      %p591 = scmp.eq.s32.totalorder %s45, 1
      %p592 = por %p590, %p591
      %p594 = scmp.ne.s32.totalorder %s577, %s593
      %p595 = scmp.eq.s32.totalorder %s45, 0
      %p596 = por %p594, %p595
      %p597 = scmp.le.s32.totalorder 1, %s39
      %p598 = scmp.lt.s32.totalorder %s39, 3
      %p599 = pnand %p597, %p598
      %p600 = pneg %p599
      // Predicated region
      $region9: #{tpu_custom_call.1} parent=5 // pred_check
        _
      $region10: #{tpu_custom_call.1} parent=5 // pred_check_branch
        %602 = sbr.rel (%p599) target = $region12
      $region11: #{tpu_custom_call.1} parent=5 // pred_region
        %s603 = ssub.s32 %s39, 1
        // Predicated region
        $region13: #{tpu_custom_call.1} parent=11 // pred_check
          %p604 = pneg %p164
        $region14: #{tpu_custom_call.1} parent=11 // pred_check_branch
          %606 = sbr.rel (%p604) target = $region16
        $region15: #{tpu_custom_call.1} parent=11 // pred_region
          _
        $region16: #{tpu_custom_call.1} parent=11 // pred_fallthru
          _
        // Predicated region
        $region17: #{tpu_custom_call.1} parent=11 // pred_check
          %p607 = pneg %p185
        $region18: #{tpu_custom_call.1} parent=11 // pred_check_branch
          %609 = sbr.rel (%p607) target = $region20
        $region19: #{tpu_custom_call.1} parent=11 // pred_region
          _
        $region20: #{tpu_custom_call.1} parent=11 // pred_fallthru
          _
        // Predicated region
        $region21: #{tpu_custom_call.1} parent=11 // pred_check
          %p610 = pneg %p206
        $region22: #{tpu_custom_call.1} parent=11 // pred_check_branch
          %612 = sbr.rel (%p610) target = $region24
        $region23: #{tpu_custom_call.1} parent=11 // pred_region
          %614 = vsyncadd [#allocation6], 0
          %s615 = sshll.u32 %s6, 4
          %s616 = int_to_ptr.hbm [resolvable:$true] %s615
          %s617 = sshll.u32 [#allocation5], 4
          %s618 = int_to_ptr.vmem [resolvable:$true] %s617
          %623 = dma.hbm_to_vmem [thread:$0]  %s616, 512, %s618, [#allocation6], 128, 128, 8
        $region24: #{tpu_custom_call.1} parent=11 // pred_fallthru
          _
        // Predicated region
        $region25: #{tpu_custom_call.1} parent=11 // pred_check
          %p624 = pneg %p227
        $region26: #{tpu_custom_call.1} parent=11 // pred_check_branch
          %626 = sbr.rel (%p624) target = $region28
        $region27: #{tpu_custom_call.1} parent=11 // pred_region
          _
        $region28: #{tpu_custom_call.1} parent=11 // pred_fallthru
          _
        // Predicated region
        $region29: #{tpu_custom_call.1} parent=11 // pred_check
          %p627 = pneg %p248
        $region30: #{tpu_custom_call.1} parent=11 // pred_check_branch
          %629 = sbr.rel (%p627) target = $region32
        $region31: #{tpu_custom_call.1} parent=11 // pred_region
          _
        $region32: #{tpu_custom_call.1} parent=11 // pred_fallthru
          _
        // Predicated region
        $region33: #{tpu_custom_call.1} parent=11 // pred_check
          %p630 = pneg %p269
        $region34: #{tpu_custom_call.1} parent=11 // pred_check_branch
          %632 = sbr.rel (%p630) target = $region36
        $region35: #{tpu_custom_call.1} parent=11 // pred_region
          _
        $region36: #{tpu_custom_call.1} parent=11 // pred_fallthru
          _
        // Predicated region
        $region37: #{tpu_custom_call.1} parent=11 // pred_check
          %p633 = pneg %p290
        $region38: #{tpu_custom_call.1} parent=11 // pred_check_branch
          %635 = sbr.rel (%p633) target = $region40
        $region39: #{tpu_custom_call.1} parent=11 // pred_region
          _
        $region40: #{tpu_custom_call.1} parent=11 // pred_fallthru
          _
        // Predicated region
        $region41: #{tpu_custom_call.1} parent=11 // pred_check
          %p636 = pneg %p311
        $region42: #{tpu_custom_call.1} parent=11 // pred_check_branch
          %638 = sbr.rel (%p636) target = $region44
        $region43: #{tpu_custom_call.1} parent=11 // pred_region
          _
        $region44: #{tpu_custom_call.1} parent=11 // pred_fallthru
          _
        // Predicated region
        $region45: #{tpu_custom_call.1} parent=11 // pred_check
          %p639 = pneg %p332
        $region46: #{tpu_custom_call.1} parent=11 // pred_check_branch
          %641 = sbr.rel (%p639) target = $region48
        $region47: #{tpu_custom_call.1} parent=11 // pred_region
          _
        $region48: #{tpu_custom_call.1} parent=11 // pred_fallthru
          _
        // Predicated region
        $region49: #{tpu_custom_call.1} parent=11 // pred_check
          %p642 = pneg %p353
        $region50: #{tpu_custom_call.1} parent=11 // pred_check_branch
          %644 = sbr.rel (%p642) target = $region52
        $region51: #{tpu_custom_call.1} parent=11 // pred_region
          %646 = vsyncadd [#allocation6], 0
          %s647 = sshll.u32 %s13, 4
          %s648 = int_to_ptr.hbm [resolvable:$true] %s647
          %s649 = sshll.u32 [#allocation7], 4
          %s650 = int_to_ptr.vmem [resolvable:$true] %s649
          %655 = dma.hbm_to_vmem [thread:$0]  %s648, 2048, %s650, [#allocation6], 128, 128, 8
        $region52: #{tpu_custom_call.1} parent=11 // pred_fallthru
          _
        // Predicated region
        $region53: #{tpu_custom_call.1} parent=11 // pred_check
          %p656 = pneg %p374
        $region54: #{tpu_custom_call.1} parent=11 // pred_check_branch
          %658 = sbr.rel (%p656) target = $region56
        $region55: #{tpu_custom_call.1} parent=11 // pred_region
          _
        $region56: #{tpu_custom_call.1} parent=11 // pred_fallthru
          _
        // Predicated region
        $region57: #{tpu_custom_call.1} parent=11 // pred_check
          %p659 = pneg %p395
        $region58: #{tpu_custom_call.1} parent=11 // pred_check_branch
          %661 = sbr.rel (%p659) target = $region60
        $region59: #{tpu_custom_call.1} parent=11 // pred_region
          _
        $region60: #{tpu_custom_call.1} parent=11 // pred_fallthru
          _
        // Predicated region
        $region61: #{tpu_custom_call.1} parent=11 // pred_check
          %p662 = pneg %p416
        $region62: #{tpu_custom_call.1} parent=11 // pred_check_branch
          %664 = sbr.rel (%p662) target = $region64
        $region63: #{tpu_custom_call.1} parent=11 // pred_region
          _
        $region64: #{tpu_custom_call.1} parent=11 // pred_fallthru
          _
        // Predicated region
        $region65: #{tpu_custom_call.1} parent=11 // pred_check
          %p665 = pneg %p437
        $region66: #{tpu_custom_call.1} parent=11 // pred_check_branch
          %667 = sbr.rel (%p665) target = $region68
        $region67: #{tpu_custom_call.1} parent=11 // pred_region
          _
        $region68: #{tpu_custom_call.1} parent=11 // pred_fallthru
          _
        // Predicated region
        $region69: #{tpu_custom_call.1} parent=11 // pred_check
          %p668 = pneg %p458
        $region70: #{tpu_custom_call.1} parent=11 // pred_check_branch
          %670 = sbr.rel (%p668) target = $region72
        $region71: #{tpu_custom_call.1} parent=11 // pred_region
          %672 = vsyncadd [#allocation9], 0
          %s673 = sshll.u32 %s18, 4
          %s674 = int_to_ptr.hbm [resolvable:$true] %s673
          %s675 = sshll.u32 [#allocation8], 4
          %s676 = int_to_ptr.vmem [resolvable:$true] %s675
          %681 = dma.hbm_to_vmem [thread:$0]  %s674, 1024, %s676, [#allocation9], 128, 128, 8
        $region72: #{tpu_custom_call.1} parent=11 // pred_fallthru
          _
        // Predicated region
        $region73: #{tpu_custom_call.1} parent=11 // pred_check
          %p682 = pneg %p479
        $region74: #{tpu_custom_call.1} parent=11 // pred_check_branch
          %684 = sbr.rel (%p682) target = $region76
        $region75: #{tpu_custom_call.1} parent=11 // pred_region
          _
        $region76: #{tpu_custom_call.1} parent=11 // pred_fallthru
          _
        // Predicated region
        $region77: #{tpu_custom_call.1} parent=11 // pred_check
          %p685 = pneg %p500
        $region78: #{tpu_custom_call.1} parent=11 // pred_check_branch
          %687 = sbr.rel (%p685) target = $region80
        $region79: #{tpu_custom_call.1} parent=11 // pred_region
          %689 = vsyncadd [#allocation9], 0
          %s690 = sshll.u32 %s20, 4
          %s691 = int_to_ptr.hbm [resolvable:$true] %s690
          %s692 = sshll.u32 [#allocation10], 4
          %s693 = int_to_ptr.vmem [resolvable:$true] %s692
          %698 = dma.hbm_to_vmem [thread:$0]  %s691, 6144, %s693, [#allocation9], 128, 128, 8
        $region80: #{tpu_custom_call.1} parent=11 // pred_fallthru
          _
        // Predicated region
        $region81: #{tpu_custom_call.1} parent=11 // pred_check
          %p699 = pneg %p521
        $region82: #{tpu_custom_call.1} parent=11 // pred_check_branch
          %701 = sbr.rel (%p699) target = $region84
        $region83: #{tpu_custom_call.1} parent=11 // pred_region
          _
        $region84: #{tpu_custom_call.1} parent=11 // pred_fallthru
          _
        // Predicated region
        $region85: #{tpu_custom_call.1} parent=11 // pred_check
          %p702 = pneg %p542
        $region86: #{tpu_custom_call.1} parent=11 // pred_check_branch
          %704 = sbr.rel (%p702) target = $region88
        $region87: #{tpu_custom_call.1} parent=11 // pred_region
          %706 = vsyncadd [#allocation12], 0
          %s707 = sshll.u32 %s22, 4
          %s708 = int_to_ptr.hbm [resolvable:$true] %s707
          %s709 = sshll.u32 [#allocation11], 4
          %s710 = int_to_ptr.vmem [resolvable:$true] %s709
          %715 = dma.hbm_to_vmem [thread:$0]  %s708, 2048, %s710, [#allocation12], 128, 128, 8
        $region88: #{tpu_custom_call.1} parent=11 // pred_fallthru
          _
        // Predicated region
        $region89: #{tpu_custom_call.1} parent=11 // pred_check
          %p716 = pneg %p563
        $region90: #{tpu_custom_call.1} parent=11 // pred_check_branch
          %718 = sbr.rel (%p716) target = $region92
        $region91: #{tpu_custom_call.1} parent=11 // pred_region
          _
        $region92: #{tpu_custom_call.1} parent=11 // pred_fallthru
          _
      $region12: #{tpu_custom_call.1} parent=5 // pred_fallthru
        _
      %p719 = scmp.lt.s32.totalorder %s39, 2
      // Predicated region
      $region93: #{tpu_custom_call.1} parent=5 // pred_check
        %p720 = pneg %p719
      $region94: #{tpu_custom_call.1} parent=5 // pred_check_branch
        %722 = sbr.rel (%p720) target = $region96
      $region95: #{tpu_custom_call.1} parent=5 // pred_region
        // Predicated region
        $region97: #{tpu_custom_call.1} parent=95 // pred_check
          %p723 = pneg %p59
        $region98: #{tpu_custom_call.1} parent=95 // pred_check_branch
          %725 = sbr.rel (%p723) target = $region100
        $region99: #{tpu_custom_call.1} parent=95 // pred_region
          %s726 = sand.u32 %s49, 1
          %s727 = scalar_lea.sflag [#allocation3], %s726
          %s728 = sand.u32 %s49, 1
          %s729 = smul.addr %s728, 16
          %s730 = scalar_lea.vmem [#allocation2], %s729
          %732 = vsyncadd %s727, 0
          %s733 = smul.addr %s39, 2
          %s734 = smul.addr %s733, 8
          %s735 = scalar_lea.hbm %s0, %s734
          %s736 = sshll.u32 %s735, 4
          %s737 = int_to_ptr.hbm [resolvable:$true] %s736
          %s738 = sshll.u32 %s730, 4
          %s739 = int_to_ptr.vmem [resolvable:$true] %s738
          %744 = dma.hbm_to_vmem [thread:$0]  %s737, 256, %s739, %s727, 128, 128, 8
        $region100: #{tpu_custom_call.1} parent=95 // pred_fallthru
          _
        // Predicated region
        $region101: #{tpu_custom_call.1} parent=95 // pred_check
          %p745 = pneg %p85
        $region102: #{tpu_custom_call.1} parent=95 // pred_check_branch
          %747 = sbr.rel (%p745) target = $region104
        $region103: #{tpu_custom_call.1} parent=95 // pred_region
          %p748 = scmp.lt.s32.totalorder %s39, 1
          %s749 = scalar_select %p748, %s39, 1
          %s750 = scalar_lea.vmem %s1, %s749
        $region104: #{tpu_custom_call.1} parent=95 // pred_fallthru
          _
        // Predicated region
        $region105: #{tpu_custom_call.1} parent=95 // pred_check
          %p751 = pneg %p111
        $region106: #{tpu_custom_call.1} parent=95 // pred_check_branch
          %753 = sbr.rel (%p751) target = $region108
        $region107: #{tpu_custom_call.1} parent=95 // pred_region
          %p754 = scmp.lt.s32.totalorder %s39, 1
          %s755 = scalar_select %p754, %s39, 1
          %s756 = scalar_lea.vmem %s2, %s755
        $region108: #{tpu_custom_call.1} parent=95 // pred_fallthru
          _
        // Predicated region
        $region109: #{tpu_custom_call.1} parent=95 // pred_check
          %p757 = pneg %p137
        $region110: #{tpu_custom_call.1} parent=95 // pred_check_branch
          %759 = sbr.rel (%p757) target = $region112
        $region111: #{tpu_custom_call.1} parent=95 // pred_region
          %p760 = scmp.lt.s32.totalorder %s39, 1
          %s761 = scalar_select %p760, %s39, 1
          %s762 = smul.addr %s761, 8
          %s763 = smul.addr %s762, 8
          %s764 = scalar_lea.vmem %s3, %s763
        $region112: #{tpu_custom_call.1} parent=95 // pred_fallthru
          _
      $region96: #{tpu_custom_call.1} parent=5 // pred_fallthru
        _
      %p765 = scmp.le.s32.totalorder 1, %s39
      %p766 = scmp.lt.s32.totalorder %s39, 3
      %p767 = pnand %p765, %p766
      %p768 = pneg %p767
      // Predicated region
      $region113: #{tpu_custom_call.1} parent=5 // pred_check
        _
      $region114: #{tpu_custom_call.1} parent=5 // pred_check_branch
        %770 = sbr.rel (%p767) target = $region116
      $region115: #{tpu_custom_call.1} parent=5 // pred_region
        %s771 = ssub.s32 %s39, 1
        %s772 = sand.u32 %s52, 1
        %s773 = scalar_lea.sflag [#allocation3], %s772
        %s774 = sand.u32 %s52, 1
        %s775 = smul.addr %s774, 16
        %s776 = scalar_lea.vmem [#allocation2], %s775
        // Predicated region
        $region117: #{tpu_custom_call.1} parent=115 // pred_check
          %p777 = pneg %p65
        $region118: #{tpu_custom_call.1} parent=115 // pred_check_branch
          %779 = sbr.rel (%p777) target = $region120
        $region119: #{tpu_custom_call.1} parent=115 // pred_region
          %781 = dma.done %s773, 256
        $region120: #{tpu_custom_call.1} parent=115 // pred_fallthru
          _
        // Predicated region
        $region121: #{tpu_custom_call.1} parent=115 // pred_check
          %p782 = pneg %p206
        $region122: #{tpu_custom_call.1} parent=115 // pred_check_branch
          %784 = sbr.rel (%p782) target = $region124
        $region123: #{tpu_custom_call.1} parent=115 // pred_region
          %786 = dma.done [#allocation6], 512
        $region124: #{tpu_custom_call.1} parent=115 // pred_fallthru
          _
        // Predicated region
        $region125: #{tpu_custom_call.1} parent=115 // pred_check
          %p787 = pneg %p353
        $region126: #{tpu_custom_call.1} parent=115 // pred_check_branch
          %789 = sbr.rel (%p787) target = $region128
        $region127: #{tpu_custom_call.1} parent=115 // pred_region
          %791 = dma.done [#allocation6], 2048
        $region128: #{tpu_custom_call.1} parent=115 // pred_fallthru
          _
        // Predicated region
        $region129: #{tpu_custom_call.1} parent=115 // pred_check
          %p792 = pneg %p458
        $region130: #{tpu_custom_call.1} parent=115 // pred_check_branch
          %794 = sbr.rel (%p792) target = $region132
        $region131: #{tpu_custom_call.1} parent=115 // pred_region
          %796 = dma.done [#allocation9], 1024
        $region132: #{tpu_custom_call.1} parent=115 // pred_fallthru
          _
        // Predicated region
        $region133: #{tpu_custom_call.1} parent=115 // pred_check
          %p797 = pneg %p500
        $region134: #{tpu_custom_call.1} parent=115 // pred_check_branch
          %799 = sbr.rel (%p797) target = $region136
        $region135: #{tpu_custom_call.1} parent=115 // pred_region
          %801 = dma.done [#allocation9], 6144
        $region136: #{tpu_custom_call.1} parent=115 // pred_fallthru
          _
        // Predicated region
        $region137: #{tpu_custom_call.1} parent=115 // pred_check
          %p802 = pneg %p542
        $region138: #{tpu_custom_call.1} parent=115 // pred_check_branch
          %804 = sbr.rel (%p802) target = $region140
        $region139: #{tpu_custom_call.1} parent=115 // pred_region
          %806 = dma.done [#allocation12], 2048
        $region140: #{tpu_custom_call.1} parent=115 // pred_fallthru
          _
        %s807 = sand.u32 %s52, 1
        %s808 = scalar_lea.sflag [#allocation3], %s807
        %s809 = sand.u32 %s52, 1
        %s810 = smul.addr %s809, 16
        %s811 = scalar_lea.vmem [#allocation2], %s810
        %p812 = pneg %p65
        %p813 = pneg %p62
        %p814 = scmp.lt.s32.totalorder %s44, 1
        %s815 = scalar_select %p814, %s44, 1
        %s816 = scalar_lea.vmem %s1, %s815
        %p817 = pneg %p91
        %p818 = pneg %p88
        %p819 = scmp.lt.s32.totalorder %s44, 1
        %s820 = scalar_select %p819, %s44, 1
        %s821 = scalar_lea.vmem %s2, %s820
        %p822 = pneg %p117
        %p823 = pneg %p114
        %p824 = scmp.lt.s32.totalorder %s44, 1
        %s825 = scalar_select %p824, %s44, 1
        %s826 = smul.addr %s825, 8
        %s827 = smul.addr %s826, 8
        %s828 = scalar_lea.vmem %s3, %s827
        %p829 = pneg %p143
        %p830 = pneg %p140
        %p831 = pneg %p164
        %p832 = pneg %p161
        %p833 = pneg %p185
        %p834 = pneg %p182
        %p835 = pneg %p206
        %p836 = pneg %p203
        %p837 = pneg %p227
        %p838 = pneg %p224
        %p839 = pneg %p248
        %p840 = pneg %p245
        %p841 = pneg %p269
        %p842 = pneg %p266
        %p843 = pneg %p290
        %p844 = pneg %p287
        %p845 = pneg %p311
        %p846 = pneg %p308
        %p847 = pneg %p332
        %p848 = pneg %p329
        %p849 = pneg %p353
        %p850 = pneg %p350
        %p851 = pneg %p374
        %p852 = pneg %p371
        %p853 = pneg %p395
        %p854 = pneg %p392
        %p855 = pneg %p416
        %p856 = pneg %p413
        %p857 = pneg %p437
        %p858 = pneg %p434
        %p859 = pneg %p458
        %p860 = pneg %p455
        %p861 = pneg %p479
        %p862 = pneg %p476
        %p863 = pneg %p500
        %p864 = pneg %p497
        %p865 = pneg %p521
        %p866 = pneg %p518
        %p867 = pneg %p542
        %p868 = pneg %p539
        %p869 = pneg %p563
        %p870 = pneg %p560
        %p871 = pneg %p589
        %p872 = pneg %p586
        %s873 = sand.u32 %s576, 1
        %s874 = scalar_lea.sflag [#allocation4], %s873
        %s875 = sand.u32 %s576, 1
        %s876 = scalar_lea.vmem [#allocation13], %s875
        %p877 = scmp.lt.s32.totalorder %s44, 1
        %s878 = scalar_select %p877, %s44, 1
        %s879 = scalar_lea.vmem %s1, %s878
        %p880 = scmp.lt.s32.totalorder %s44, 1
        %s881 = scalar_select %p880, %s44, 1
        %s882 = scalar_lea.vmem %s2, %s881
        %p883 = scmp.lt.s32.totalorder %s44, 1
        %s884 = scalar_select %p883, %s44, 1
        %s885 = smul.addr %s884, 8
        %s886 = smul.addr %s885, 8
        %s887 = scalar_lea.vmem %s3, %s886
        %v888 = vld [vmem:[%s776] sm:$0xff]
        %v889 = vld [vmem:[%s776 + $0x8] sm:$0xff]
        %vm890 = vcmask 261120
        %v891 = vsel %vm890, %v888, 0.0
        %892 = vadd.xlane.f32.xlu0 %v891
        %v893 = vpop.xlane.xlu0 %892
        %v894 = vsel %vm890, %v889, 0.0
        %895 = vadd.xlane.f32.xlu0 %v894
        %v896 = vpop.xlane.xlu0 %895
        %v897 = vrcp.pop 32.0
        %v898 = vmul.f32 32.0, %v897
        %v899 = vsub.f32 1.0, %v898
        %v900 = vmul.f32 %v897, %v899
        %v901 = vadd.f32 %v897, %v900
        %vm902 = vweird.f32 %v897
        %v903 = vsel %vm902, %v897, %v901
        %v904 = vmul.f32 %v893, %v903
        %v905 = vmul.f32 %v896, %v903
        %v906 = vsub.f32 %v888, %v904
        %v907 = vsub.f32 %v889, %v905
        %v908 = vmul.f32 %v906, %v906
        %v909 = vmul.f32 %v907, %v907
        %v910 = vsel %vm890, %v908, 0.0
        %911 = vadd.xlane.f32.xlu0 %v910
        %v912 = vpop.xlane.xlu0 %911
        %v913 = vsel %vm890, %v909, 0.0
        %914 = vadd.xlane.f32.xlu0 %v913
        %v915 = vpop.xlane.xlu0 %914
        %v916 = vmul.f32 %v912, 0.032258064
        %v917 = vmul.f32 %v915, 0.032258064
        %v918 = vrsqrt.pop %v916
        %v919 = vmul.f32 %v918, %v916
        %v920 = vmul.f32 %v919, %v918
        %v921 = vmul.f32 0.5, %v920
        %v922 = vsub.f32 1.5, %v921
        %v923 = vmul.f32 %v918, %v922
        %v924 = vmul.f32 %v916, %v923
        %vm925 = vcmp.eq.f32.partialorder %v916, inf
        %v926 = vsel %vm925, %v916, %v924
        %vm927 = vcmp.eq.f32.partialorder %v916, 0.0
        %v928 = vand.u32 %v916, 2147483648
        %v929 = vsel %vm927, %v928, %v926
        %v930 = vrsqrt.pop %v917
        %v931 = vmul.f32 %v930, %v917
        %v932 = vmul.f32 %v931, %v930
        %v933 = vmul.f32 0.5, %v932
        %v934 = vsub.f32 1.5, %v933
        %v935 = vmul.f32 %v930, %v934
        %v936 = vmul.f32 %v917, %v935
        %vm937 = vcmp.eq.f32.partialorder %v917, inf
        %v938 = vsel %vm937, %v917, %v936
        %vm939 = vcmp.eq.f32.partialorder %v917, 0.0
        %v940 = vand.u32 %v917, 2147483648
        %v941 = vsel %vm939, %v940, %v938
        %v942 = vadd.f32 %v929, 1e-06
        %v943 = vadd.f32 %v941, 1e-06
        %v944 = vrcp.pop %v942
        %v945 = vrcp.pop %v943
        %v946 = vld [vmem:[%s4] sm:$0x1]
        %v948 = vperm.slane %v946, 0
        %v950 = vmul.f32 %v948, %v906
        %v951 = vmul.f32 %v948, %v907
        %v952 = vmul.f32 %v950, %v944
        %v953 = vmul.f32 %v951, %v945
        %v954 = vld [vmem:[%s5] sm:$0x1]
        %v956 = vperm.slane %v954, 0
        %v958 = vadd.f32 %v952, %v956
        %v959 = vadd.f32 %v953, %v956
        %v960 = vld [vmem:[#allocation5] sm:$0xff]
        %v961 = vld [vmem:[#allocation5 + $0x8] sm:$0xff]
        %v962 = vld [vmem:[#allocation5 + $0x10] sm:$0xff]
        %v963 = vld [vmem:[#allocation5 + $0x18] sm:$0xff]
        %v964 = vld [vmem:[%s7] sm:$0x1]
        %v966 = vperm.slane %v964, 0
        %v969 = vsel %vm890, %v958, 0
        %v972 = vsel %vm890, %v959, 0
        %974 = vmatpush.msra.mxu0 0.0
        %975 = vmatpush.msra.mxu0 0.0
        %976 = vmatpush.msra.mxu0 0.0
        %977 = vmatpush.msra.mxu0 0.0
        %978 = vmatpush.msra.mxu0 0.0
        %979 = vmatpush.msra.mxu0 0.0
        %980 = vmatpush.msra.mxu0 0.0
        %981 = vmatpush.msra.mxu0 0.0
        %982 = vmatpush.msra.mxu0 0.0
        %983 = vmatpush.msra.mxu0 0.0
        %984 = vmatpush.msra.mxu0 0.0
        %985 = vmatpush.msra.mxu0 0.0
        %986 = vmatpush.msra.mxu0 %v963
        %987 = vmatpush.msra.mxu0 %v962
        %988 = vmatpush.msra.mxu0 %v961
        %989 = vmatpush.msra.mxu0 %v960
        %990 = vmatmul.f32.gmra.mxu0 %v969
        %v991 = vpop.f32.mrf.mxu0
        %v992 = vadd.f32 %v966, %v991
        %993 = vmatmul.f32.gmra.mxu0 %v972
        %v994 = vpop.f32.mrf.mxu0
        %v995 = vadd.f32 %v966, %v994
        %996 = vdwg.mxu0
        %v997 = vld [vmem:[%s8] sm:$0xff]
        %v998 = vld [vmem:[%s8 + $0x8] sm:$0xff]
        %v999 = vld [vmem:[%s8 + $0x10] sm:$0xff]
        %v1000 = vld [vmem:[%s8 + $0x18] sm:$0xff]
        %v1001 = vld [vmem:[%s8 + $0x20] sm:$0xff]
        %v1002 = vld [vmem:[%s8 + $0x28] sm:$0xff]
        %v1003 = vld [vmem:[%s8 + $0x30] sm:$0xff]
        %v1004 = vld [vmem:[%s8 + $0x38] sm:$0xff]
        %v1005 = vld [vmem:[%s8 + $0x40] sm:$0xff]
        %v1006 = vld [vmem:[%s8 + $0x48] sm:$0xff]
        %v1007 = vld [vmem:[%s8 + $0x50] sm:$0xff]
        %v1008 = vld [vmem:[%s8 + $0x58] sm:$0xff]
        %v1009 = vld [vmem:[%s8 + $0x60] sm:$0xff]
        %v1010 = vld [vmem:[%s8 + $0x68] sm:$0xff]
        %v1011 = vld [vmem:[%s8 + $0x70] sm:$0xff]
        %v1012 = vld [vmem:[%s8 + $0x78] sm:$0xff]
        %v1013 = vld [vmem:[%s9] sm:$0x1]
        %v1015 = vperm.slane %v1013, 0
        %1017 = vmatpush.msra.mxu0 %v1012
        %1018 = vmatpush.msra.mxu0 %v1011
        %1019 = vmatpush.msra.mxu0 %v1010
        %1020 = vmatpush.msra.mxu0 %v1009
        %1021 = vmatpush.msra.mxu0 %v1008
        %1022 = vmatpush.msra.mxu0 %v1007
        %1023 = vmatpush.msra.mxu0 %v1006
        %1024 = vmatpush.msra.mxu0 %v1005
        %1025 = vmatpush.msra.mxu0 %v1004
        %1026 = vmatpush.msra.mxu0 %v1003
        %1027 = vmatpush.msra.mxu0 %v1002
        %1028 = vmatpush.msra.mxu0 %v1001
        %1029 = vmatpush.msra.mxu0 %v1000
        %1030 = vmatpush.msra.mxu0 %v999
        %1031 = vmatpush.msra.mxu0 %v998
        %1032 = vmatpush.msra.mxu0 %v997
        %1033 = vmatmul.f32.gmra.mxu0 %v992
        %v1034 = vpop.f32.mrf.mxu0
        %v1035 = vadd.f32 %v1015, %v1034
        %1036 = vmatmul.f32.gmra.mxu0 %v995
        %v1037 = vpop.f32.mrf.mxu0
        %v1038 = vadd.f32 %v1015, %v1037
        %1039 = vdwg.mxu0
        %v1040 = vld [vmem:[%s10] sm:$0xff]
        %v1041 = vld [vmem:[%s10 + $0x8] sm:$0xff]
        %v1042 = vld [vmem:[%s10 + $0x10] sm:$0xff]
        %v1043 = vld [vmem:[%s10 + $0x18] sm:$0xff]
        %v1044 = vld [vmem:[%s10 + $0x20] sm:$0xff]
        %v1045 = vld [vmem:[%s10 + $0x28] sm:$0xff]
        %v1046 = vld [vmem:[%s10 + $0x30] sm:$0xff]
        %v1047 = vld [vmem:[%s10 + $0x38] sm:$0xff]
        %v1048 = vld [vmem:[%s10 + $0x40] sm:$0xff]
        %v1049 = vld [vmem:[%s10 + $0x48] sm:$0xff]
        %v1050 = vld [vmem:[%s10 + $0x50] sm:$0xff]
        %v1051 = vld [vmem:[%s10 + $0x58] sm:$0xff]
        %v1052 = vld [vmem:[%s10 + $0x60] sm:$0xff]
        %v1053 = vld [vmem:[%s10 + $0x68] sm:$0xff]
        %v1054 = vld [vmem:[%s10 + $0x70] sm:$0xff]
        %v1055 = vld [vmem:[%s10 + $0x78] sm:$0xff]
        %v1056 = vld [vmem:[%s11] sm:$0x1]
        %v1058 = vperm.slane %v1056, 0
        %1060 = vmatpush.msra.mxu0 %v1055
        %1061 = vmatpush.msra.mxu0 %v1054
        %1062 = vmatpush.msra.mxu0 %v1053
        %1063 = vmatpush.msra.mxu0 %v1052
        %1064 = vmatpush.msra.mxu0 %v1051
        %1065 = vmatpush.msra.mxu0 %v1050
        %1066 = vmatpush.msra.mxu0 %v1049
        %1067 = vmatpush.msra.mxu0 %v1048
        %1068 = vmatpush.msra.mxu0 %v1047
        %1069 = vmatpush.msra.mxu0 %v1046
        %1070 = vmatpush.msra.mxu0 %v1045
        %1071 = vmatpush.msra.mxu0 %v1044
        %1072 = vmatpush.msra.mxu0 %v1043
        %1073 = vmatpush.msra.mxu0 %v1042
        %1074 = vmatpush.msra.mxu0 %v1041
        %1075 = vmatpush.msra.mxu0 %v1040
        %1076 = vmatmul.f32.gmra.mxu0 %v992
        %v1077 = vpop.f32.mrf.mxu0
        %v1078 = vadd.f32 %v1058, %v1077
        %1079 = vmatmul.f32.gmra.mxu0 %v995
        %v1080 = vpop.f32.mrf.mxu0
        %v1081 = vadd.f32 %v1058, %v1080
        %1082 = vdwg.mxu0
        %v1083 = vld [vmem:[%s12] sm:$0xff]
        %v1084 = vld [vmem:[%s12 + $0x8] sm:$0xff]
        %v1085 = vld [vmem:[%s12 + $0x10] sm:$0xff]
        %v1086 = vld [vmem:[%s12 + $0x18] sm:$0xff]
        %v1087 = vld [vmem:[%s12 + $0x20] sm:$0xff]
        %v1088 = vld [vmem:[%s12 + $0x28] sm:$0xff]
        %v1089 = vld [vmem:[%s12 + $0x30] sm:$0xff]
        %v1090 = vld [vmem:[%s12 + $0x38] sm:$0xff]
        %v1091 = vmul.f32 %v1035, %v1083
        %v1092 = vmul.f32 %v1038, %v1084
        %v1093 = vmul.f32 %v1035, %v1085
        %v1094 = vmul.f32 %v1038, %v1086
        %v1095 = vmul.f32 %v1035, %v1087
        %v1096 = vmul.f32 %v1038, %v1088
        %v1097 = vmul.f32 %v1035, %v1089
        %v1098 = vmul.f32 %v1038, %v1090
        %1099 = vmatpush.xpose.msra.mxu0 0.0
        %1100 = vmatpush.xpose.msra.mxu0 0.0
        %1101 = vmatpush.xpose.msra.mxu0 0.0
        %1102 = vmatpush.xpose.msra.mxu0 0.0
        %1103 = vmatpush.xpose.msra.mxu0 0.0
        %1104 = vmatpush.xpose.msra.mxu0 0.0
        %1105 = vmatpush.xpose.msra.mxu0 0.0
        %1106 = vmatpush.xpose.msra.mxu0 0.0
        %1107 = vmatpush.xpose.msra.mxu0 0.0
        %1108 = vmatpush.xpose.msra.mxu0 0.0
        %1109 = vmatpush.xpose.msra.mxu0 0.0
        %1110 = vmatpush.xpose.msra.mxu0 0.0
        %1111 = vmatpush.xpose.msra.mxu0 0.0
        %1112 = vmatpush.xpose.msra.mxu0 0.0
        %1113 = vmatpush.xpose.msra.mxu0 %v1081
        %1114 = vmatpush.xpose.msra.mxu0 %v1078
        %1115 = vmatmul.f32.gmra.mxu0 %v1091
        %v1116 = vpop.f32.mrf.mxu0
        %v1117 = vadd.f32 0.0, %v1116
        %1118 = vmatmul.f32.gmra.mxu0 %v1092
        %v1119 = vpop.f32.mrf.mxu0
        %v1120 = vadd.f32 0.0, %v1119
        %1121 = vmatmul.f32.gmra.mxu0 %v1093
        %v1122 = vpop.f32.mrf.mxu0
        %v1123 = vadd.f32 0.0, %v1122
        %1124 = vmatmul.f32.gmra.mxu0 %v1094
        %v1125 = vpop.f32.mrf.mxu0
        %v1126 = vadd.f32 0.0, %v1125
        %1127 = vmatmul.f32.gmra.mxu0 %v1095
        %v1128 = vpop.f32.mrf.mxu0
        %v1129 = vadd.f32 0.0, %v1128
        %1130 = vmatmul.f32.gmra.mxu0 %v1096
        %v1131 = vpop.f32.mrf.mxu0
        %v1132 = vadd.f32 0.0, %v1131
        %1133 = vmatmul.f32.gmra.mxu0 %v1097
        %v1134 = vpop.f32.mrf.mxu0
        %v1135 = vadd.f32 0.0, %v1134
        %1136 = vmatmul.f32.gmra.mxu0 %v1098
        %v1137 = vpop.f32.mrf.mxu0
        %v1138 = vadd.f32 0.0, %v1137
        %1139 = vdwg.mxu0
        %v1140 = vmul.f32 %v1117, 0.2
        %v1141 = vmul.f32 %v1120, 0.2
        %v1142 = vmul.f32 %v1123, 0.2
        %v1143 = vmul.f32 %v1126, 0.2
        %v1144 = vmul.f32 %v1129, 0.2
        %v1145 = vmul.f32 %v1132, 0.2
        %v1146 = vmul.f32 %v1135, 0.2
        %v1147 = vmul.f32 %v1138, 0.2
        %v1148 = vld [vmem:[%s879] sm:$0x1]
        %vm1149 = vcmp.eq.f32.partialorder %v1148, 0.0
        %v1150 = vsel %vm1149, 1, 0
        %v1151 = vperm.slane %v1150, 0
        %vm1152 = vcmp.eq.s32.totalorder %v1151, 1
        %v1153 = vsel %vm1152, -1e+09, %v1140
        %v1154 = vsel %vm1152, -1e+09, %v1141
        %v1155 = vsel %vm1152, -1e+09, %v1142
        %v1156 = vsel %vm1152, -1e+09, %v1143
        %v1157 = vsel %vm1152, -1e+09, %v1144
        %v1158 = vsel %vm1152, -1e+09, %v1145
        %v1159 = vsel %vm1152, -1e+09, %v1146
        %v1160 = vsel %vm1152, -1e+09, %v1147
        %v1161 = vld [vmem:[%s887] sm:$0xff]
        %v1162 = vld [vmem:[%s887 + $0x8] sm:$0xff]
        %v1163 = vld [vmem:[%s887 + $0x10] sm:$0xff]
        %v1164 = vld [vmem:[%s887 + $0x18] sm:$0xff]
        %v1165 = vld [vmem:[%s887 + $0x20] sm:$0xff]
        %v1166 = vld [vmem:[%s887 + $0x28] sm:$0xff]
        %v1167 = vld [vmem:[%s887 + $0x30] sm:$0xff]
        %v1168 = vld [vmem:[%s887 + $0x38] sm:$0xff]
        %v1169 = vadd.f32 %v1153, %v1161
        %v1170 = vadd.f32 %v1154, %v1162
        %v1171 = vadd.f32 %v1155, %v1163
        %v1172 = vadd.f32 %v1156, %v1164
        %v1173 = vadd.f32 %v1157, %v1165
        %v1174 = vadd.f32 %v1158, %v1166
        %v1175 = vadd.f32 %v1159, %v1167
        %v1176 = vadd.f32 %v1160, %v1168
        %vm1177 = vcmask 130048
        %v1178 = vsel %vm1177, %v1169, -inf
        %1179 = vmax.xlane.f32.xlu0 %v1178
        %v1180 = vpop.xlane.xlu0 %1179
        %v1181 = vsel %vm1177, %v1170, -inf
        %1182 = vmax.xlane.f32.xlu0 %v1181
        %v1183 = vpop.xlane.xlu0 %1182
        %v1184 = vsel %vm1177, %v1171, -inf
        %1185 = vmax.xlane.f32.xlu0 %v1184
        %v1186 = vpop.xlane.xlu0 %1185
        %v1187 = vsel %vm1177, %v1172, -inf
        %1188 = vmax.xlane.f32.xlu0 %v1187
        %v1189 = vpop.xlane.xlu0 %1188
        %v1190 = vsel %vm1177, %v1173, -inf
        %1191 = vmax.xlane.f32.xlu0 %v1190
        %v1192 = vpop.xlane.xlu0 %1191
        %v1193 = vsel %vm1177, %v1174, -inf
        %1194 = vmax.xlane.f32.xlu0 %v1193
        %v1195 = vpop.xlane.xlu0 %1194
        %v1196 = vsel %vm1177, %v1175, -inf
        %1197 = vmax.xlane.f32.xlu0 %v1196
        %v1198 = vpop.xlane.xlu0 %1197
        %v1199 = vsel %vm1177, %v1176, -inf
        %1200 = vmax.xlane.f32.xlu0 %v1199
        %v1201 = vpop.xlane.xlu0 %1200
        %v1202 = vsub.f32 %v1169, %v1180
        %v1203 = vsub.f32 %v1170, %v1183
        %v1204 = vsub.f32 %v1171, %v1186
        %v1205 = vsub.f32 %v1172, %v1189
        %v1206 = vsub.f32 %v1173, %v1192
        %v1207 = vsub.f32 %v1174, %v1195
        %v1208 = vsub.f32 %v1175, %v1198
        %v1209 = vsub.f32 %v1176, %v1201
        %v1210 = vmul.f32 %v1202, 1.442695
        %v1211 = vpow.pop %v1210
        %v1212 = vmul.f32 %v1203, 1.442695
        %v1213 = vpow.pop %v1212
        %v1214 = vmul.f32 %v1204, 1.442695
        %v1215 = vpow.pop %v1214
        %v1216 = vmul.f32 %v1205, 1.442695
        %v1217 = vpow.pop %v1216
        %v1218 = vmul.f32 %v1206, 1.442695
        %v1219 = vpow.pop %v1218
        %v1220 = vmul.f32 %v1207, 1.442695
        %v1221 = vpow.pop %v1220
        %v1222 = vmul.f32 %v1208, 1.442695
        %v1223 = vpow.pop %v1222
        %v1224 = vmul.f32 %v1209, 1.442695
        %v1225 = vpow.pop %v1224
        %v1226 = vsel %vm1177, %v1211, 0.0
        %1227 = vadd.xlane.f32.xlu0 %v1226
        %v1228 = vpop.xlane.xlu0 %1227
        %v1229 = vsel %vm1177, %v1213, 0.0
        %1230 = vadd.xlane.f32.xlu0 %v1229
        %v1231 = vpop.xlane.xlu0 %1230
        %v1232 = vsel %vm1177, %v1215, 0.0
        %1233 = vadd.xlane.f32.xlu0 %v1232
        %v1234 = vpop.xlane.xlu0 %1233
        %v1235 = vsel %vm1177, %v1217, 0.0
        %1236 = vadd.xlane.f32.xlu0 %v1235
        %v1237 = vpop.xlane.xlu0 %1236
        %v1238 = vsel %vm1177, %v1219, 0.0
        %1239 = vadd.xlane.f32.xlu0 %v1238
        %v1240 = vpop.xlane.xlu0 %1239
        %v1241 = vsel %vm1177, %v1221, 0.0
        %1242 = vadd.xlane.f32.xlu0 %v1241
        %v1243 = vpop.xlane.xlu0 %1242
        %v1244 = vsel %vm1177, %v1223, 0.0
        %1245 = vadd.xlane.f32.xlu0 %v1244
        %v1246 = vpop.xlane.xlu0 %1245
        %v1247 = vsel %vm1177, %v1225, 0.0
        %1248 = vadd.xlane.f32.xlu0 %v1247
        %v1249 = vpop.xlane.xlu0 %1248
        %v1250 = vrcp.pop %v1228
        %v1251 = vrcp.pop %v1231
        %v1252 = vrcp.pop %v1234
        %v1253 = vrcp.pop %v1237
        %v1254 = vrcp.pop %v1240
        %v1255 = vrcp.pop %v1243
        %v1256 = vrcp.pop %v1246
        %v1257 = vrcp.pop %v1249
        %v1258 = vmul.f32 %v1211, %v1250
        %v1259 = vmul.f32 %v1213, %v1251
        %v1260 = vmul.f32 %v1215, %v1252
        %v1261 = vmul.f32 %v1217, %v1253
        %v1262 = vmul.f32 %v1219, %v1254
        %v1263 = vmul.f32 %v1221, %v1255
        %v1264 = vmul.f32 %v1223, %v1256
        %v1265 = vmul.f32 %v1225, %v1257
        %v1266 = vadd.f32 %v1258, %v1260
        %v1267 = vadd.f32 %v1259, %v1261
        %v1268 = vadd.f32 %v1266, %v1262
        %v1269 = vadd.f32 %v1267, %v1263
        %v1270 = vadd.f32 %v1268, %v1264
        %v1271 = vadd.f32 %v1269, %v1265
        %v1272 = vmul.f32 %v1270, 0.25
        %v1273 = vmul.f32 %v1271, 0.25
        %v1275 = vsel %vm1177, %v1272, 0
        %v1278 = vsel %vm1177, %v1273, 0
        %1280 = vmatpush.msra.mxu0 0.0
        %1281 = vmatpush.msra.mxu0 0.0
        %1282 = vmatpush.msra.mxu0 0.0
        %1283 = vmatpush.msra.mxu0 0.0
        %1284 = vmatpush.msra.mxu0 0.0
        %1285 = vmatpush.msra.mxu0 0.0
        %1286 = vmatpush.msra.mxu0 0.0
        %1287 = vmatpush.msra.mxu0 0.0
        %1288 = vmatpush.msra.mxu0 0.0
        %1289 = vmatpush.msra.mxu0 0.0
        %1290 = vmatpush.msra.mxu0 0.0
        %1291 = vmatpush.msra.mxu0 0.0
        %1292 = vmatpush.msra.mxu0 0.0
        %1293 = vmatpush.msra.mxu0 0.0
        %1294 = vmatpush.msra.mxu0 %v995
        %1295 = vmatpush.msra.mxu0 %v992
        %1296 = vmatmul.f32.gmra.mxu0 %v1275
        %v1297 = vpop.f32.mrf.mxu0
        %v1298 = vadd.f32 0.0, %v1297
        %1299 = vmatmul.f32.gmra.mxu0 %v1278
        %v1300 = vpop.f32.mrf.mxu0
        %v1301 = vadd.f32 0.0, %v1300
        %1302 = vdwg.mxu0
        %v1303 = vld [vmem:[#allocation7] sm:$0xff]
        %v1304 = vld [vmem:[#allocation7 + $0x8] sm:$0xff]
        %v1305 = vld [vmem:[#allocation7 + $0x10] sm:$0xff]
        %v1306 = vld [vmem:[#allocation7 + $0x18] sm:$0xff]
        %v1307 = vld [vmem:[#allocation7 + $0x20] sm:$0xff]
        %v1308 = vld [vmem:[#allocation7 + $0x28] sm:$0xff]
        %v1309 = vld [vmem:[#allocation7 + $0x30] sm:$0xff]
        %v1310 = vld [vmem:[#allocation7 + $0x38] sm:$0xff]
        %v1311 = vld [vmem:[#allocation7 + $0x40] sm:$0xff]
        %v1312 = vld [vmem:[#allocation7 + $0x48] sm:$0xff]
        %v1313 = vld [vmem:[#allocation7 + $0x50] sm:$0xff]
        %v1314 = vld [vmem:[#allocation7 + $0x58] sm:$0xff]
        %v1315 = vld [vmem:[#allocation7 + $0x60] sm:$0xff]
        %v1316 = vld [vmem:[#allocation7 + $0x68] sm:$0xff]
        %v1317 = vld [vmem:[#allocation7 + $0x70] sm:$0xff]
        %v1318 = vld [vmem:[#allocation7 + $0x78] sm:$0xff]
        %v1319 = vld [vmem:[%s14] sm:$0x1]
        %v1321 = vperm.slane %v1319, 0
        %1323 = vmatpush.msra.mxu0 %v1318
        %1324 = vmatpush.msra.mxu0 %v1317
        %1325 = vmatpush.msra.mxu0 %v1316
        %1326 = vmatpush.msra.mxu0 %v1315
        %1327 = vmatpush.msra.mxu0 %v1314
        %1328 = vmatpush.msra.mxu0 %v1313
        %1329 = vmatpush.msra.mxu0 %v1312
        %1330 = vmatpush.msra.mxu0 %v1311
        %1331 = vmatpush.msra.mxu0 %v1310
        %1332 = vmatpush.msra.mxu0 %v1309
        %1333 = vmatpush.msra.mxu0 %v1308
        %1334 = vmatpush.msra.mxu0 %v1307
        %1335 = vmatpush.msra.mxu0 %v1306
        %1336 = vmatpush.msra.mxu0 %v1305
        %1337 = vmatpush.msra.mxu0 %v1304
        %1338 = vmatpush.msra.mxu0 %v1303
        %1339 = vmatmul.f32.gmra.mxu0 %v1298
        %v1340 = vpop.f32.mrf.mxu0
        %v1341 = vadd.f32 %v1321, %v1340
        %1342 = vmatmul.f32.gmra.mxu0 %v1301
        %v1343 = vpop.f32.mrf.mxu0
        %v1344 = vadd.f32 %v1321, %v1343
        %1345 = vdwg.mxu0
        %v1346 = vmax.f32 %v1341, 0.0
        %v1347 = vmax.f32 %v1344, 0.0
        %v1348 = vld [vmem:[%s17] sm:$0xff]
        %v1349 = vld [vmem:[%s17 + $0x8] sm:$0xff]
        %v1350 = vld [vmem:[%s17 + $0x10] sm:$0xff]
        %v1351 = vld [vmem:[%s17 + $0x18] sm:$0xff]
        %v1352 = vld [vmem:[%s17 + $0x20] sm:$0xff]
        %v1353 = vld [vmem:[%s17 + $0x28] sm:$0xff]
        %v1354 = vld [vmem:[%s17 + $0x30] sm:$0xff]
        %v1355 = vld [vmem:[%s17 + $0x38] sm:$0xff]
        %v1356 = vld [vmem:[%s17 + $0x40] sm:$0xff]
        %v1357 = vld [vmem:[%s17 + $0x48] sm:$0xff]
        %v1358 = vld [vmem:[%s17 + $0x50] sm:$0xff]
        %v1359 = vld [vmem:[%s17 + $0x58] sm:$0xff]
        %v1360 = vld [vmem:[%s17 + $0x60] sm:$0xff]
        %v1361 = vld [vmem:[%s17 + $0x68] sm:$0xff]
        %v1362 = vld [vmem:[%s17 + $0x70] sm:$0xff]
        %v1363 = vld [vmem:[%s17 + $0x78] sm:$0xff]
        %1364 = vxpose.xlu0.b32.start [1/16] %v1348, 128
        %1365 = vxpose.xlu0.b32.cont [2/16] %v1349, 128
        %1366 = vxpose.xlu0.b32.cont [3/16] %v1350, 128
        %1367 = vxpose.xlu0.b32.cont [4/16] %v1351, 128
        %1368 = vxpose.xlu0.b32.cont [5/16] %v1352, 128
        %1369 = vxpose.xlu0.b32.cont [6/16] %v1353, 128
        %1370 = vxpose.xlu0.b32.cont [7/16] %v1354, 128
        %1371 = vxpose.xlu0.b32.cont [8/16] %v1355, 128
        %1372 = vxpose.xlu0.b32.cont [9/16] %v1356, 128
        %1373 = vxpose.xlu0.b32.cont [10/16] %v1357, 128
        %1374 = vxpose.xlu0.b32.cont [11/16] %v1358, 128
        %1375 = vxpose.xlu0.b32.cont [12/16] %v1359, 128
        %1376 = vxpose.xlu0.b32.cont [13/16] %v1360, 128
        %1377 = vxpose.xlu0.b32.cont [14/16] %v1361, 128
        %1378 = vxpose.xlu0.b32.cont [15/16] %v1362, 128
        %1379 = vxpose.xlu0.b32.end [16/16] %v1363, 128
        %v1380 = vpop.trf.xlu0
        %v1381 = vpop.trf.xlu0
        %v1382 = vpop.trf.xlu0
        %v1383 = vpop.trf.xlu0
        %v1384 = vpop.trf.xlu0
        %v1385 = vpop.trf.xlu0
        %v1386 = vpop.trf.xlu0
        %v1387 = vpop.trf.xlu0
        %v1388 = vpop.trf.xlu0
        %v1389 = vpop.trf.xlu0
        %v1390 = vpop.trf.xlu0
        %v1391 = vpop.trf.xlu0
        %v1392 = vpop.trf.xlu0
        %v1393 = vpop.trf.xlu0
        %v1394 = vpop.trf.xlu0
        %v1395 = vpop.trf.xlu0
        %1396 = vmatpush.xpose.msra.mxu0 0.0
        %1397 = vmatpush.xpose.msra.mxu0 0.0
        %1398 = vmatpush.xpose.msra.mxu0 0.0
        %1399 = vmatpush.xpose.msra.mxu0 0.0
        %1400 = vmatpush.xpose.msra.mxu0 0.0
        %1401 = vmatpush.xpose.msra.mxu0 0.0
        %1402 = vmatpush.xpose.msra.mxu0 0.0
        %1403 = vmatpush.xpose.msra.mxu0 0.0
        %1404 = vmatpush.xpose.msra.mxu0 0.0
        %1405 = vmatpush.xpose.msra.mxu0 0.0
        %1406 = vmatpush.xpose.msra.mxu0 0.0
        %1407 = vmatpush.xpose.msra.mxu0 0.0
        %1408 = vmatpush.xpose.msra.mxu0 0.0
        %1409 = vmatpush.xpose.msra.mxu0 0.0
        %1410 = vmatpush.xpose.msra.mxu0 %v1347
        %1411 = vmatpush.xpose.msra.mxu0 %v1346
        %1412 = vmatmul.f32.gmra.mxu0 %v1380
        %v1413 = vpop.f32.mrf.mxu0
        %v1414 = vadd.f32 0.0, %v1413
        %1415 = vdwg.mxu0
        %v1416 = vld [vmem:[%s16] sm:$0xff]
        %v1417 = vld [vmem:[%s16 + $0x8] sm:$0xff]
        %v1418 = vld [vmem:[%s16 + $0x10] sm:$0xff]
        %v1419 = vld [vmem:[%s16 + $0x18] sm:$0xff]
        %v1420 = vld [vmem:[%s16 + $0x20] sm:$0xff]
        %v1421 = vld [vmem:[%s16 + $0x28] sm:$0xff]
        %v1422 = vld [vmem:[%s16 + $0x30] sm:$0xff]
        %v1423 = vld [vmem:[%s16 + $0x38] sm:$0xff]
        %vm1424 = vcmask 64512
        %v1426 = vsel %vm1424, %v1416, 0
        %v1429 = vsel %vm1424, %v1417, 0
        %v1432 = vsel %vm1424, %v1418, 0
        %v1435 = vsel %vm1424, %v1419, 0
        %v1438 = vsel %vm1424, %v1420, 0
        %v1441 = vsel %vm1424, %v1421, 0
        %v1444 = vsel %vm1424, %v1422, 0
        %v1447 = vsel %vm1424, %v1423, 0
        %1449 = vmatpush.msra.mxu0 0.0
        %1450 = vmatpush.msra.mxu0 0.0
        %1451 = vmatpush.msra.mxu0 0.0
        %1452 = vmatpush.msra.mxu0 0.0
        %1453 = vmatpush.msra.mxu0 0.0
        %1454 = vmatpush.msra.mxu0 0.0
        %1455 = vmatpush.msra.mxu0 0.0
        %1456 = vmatpush.msra.mxu0 0.0
        %1457 = vmatpush.msra.mxu0 0.0
        %1458 = vmatpush.msra.mxu0 0.0
        %1459 = vmatpush.msra.mxu0 0.0
        %1460 = vmatpush.msra.mxu0 0.0
        %1461 = vmatpush.msra.mxu0 0.0
        %1462 = vmatpush.msra.mxu0 0.0
        %1463 = vmatpush.msra.mxu0 0.0
        %1464 = vmatpush.msra.mxu0 %v1414
        %1465 = vmatmul.f32.gmra.mxu0 %v1426
        %v1466 = vpop.f32.mrf.mxu0
        %v1467 = vadd.f32 0.0, %v1466
        %1468 = vmatmul.f32.gmra.mxu0 %v1429
        %v1469 = vpop.f32.mrf.mxu0
        %v1470 = vadd.f32 0.0, %v1469
        %1471 = vmatmul.f32.gmra.mxu0 %v1432
        %v1472 = vpop.f32.mrf.mxu0
        %v1473 = vadd.f32 0.0, %v1472
        %1474 = vmatmul.f32.gmra.mxu0 %v1435
        %v1475 = vpop.f32.mrf.mxu0
        %v1476 = vadd.f32 0.0, %v1475
        %1477 = vmatmul.f32.gmra.mxu0 %v1438
        %v1478 = vpop.f32.mrf.mxu0
        %v1479 = vadd.f32 0.0, %v1478
        %1480 = vmatmul.f32.gmra.mxu0 %v1441
        %v1481 = vpop.f32.mrf.mxu0
        %v1482 = vadd.f32 0.0, %v1481
        %1483 = vmatmul.f32.gmra.mxu0 %v1444
        %v1484 = vpop.f32.mrf.mxu0
        %v1485 = vadd.f32 0.0, %v1484
        %1486 = vmatmul.f32.gmra.mxu0 %v1447
        %v1487 = vpop.f32.mrf.mxu0
        %v1488 = vadd.f32 0.0, %v1487
        %1489 = vdwg.mxu0
        %v1490 = vld [vmem:[%s15] sm:$0xff]
        %v1491 = vld [vmem:[%s15 + $0x8] sm:$0xff]
        %v1492 = vld [vmem:[%s15 + $0x10] sm:$0xff]
        %v1493 = vld [vmem:[%s15 + $0x18] sm:$0xff]
        %v1494 = vld [vmem:[%s15 + $0x20] sm:$0xff]
        %v1495 = vld [vmem:[%s15 + $0x28] sm:$0xff]
        %v1496 = vld [vmem:[%s15 + $0x30] sm:$0xff]
        %v1497 = vld [vmem:[%s15 + $0x38] sm:$0xff]
        %v1498 = vld [vmem:[#allocation8] sm:$0xff]
        %v1499 = vld [vmem:[#allocation8 + $0x8] sm:$0xff]
        %v1500 = vld [vmem:[#allocation8 + $0x10] sm:$0xff]
        %v1501 = vld [vmem:[#allocation8 + $0x18] sm:$0xff]
        %v1502 = vld [vmem:[#allocation8 + $0x20] sm:$0xff]
        %v1503 = vld [vmem:[#allocation8 + $0x28] sm:$0xff]
        %v1504 = vld [vmem:[#allocation8 + $0x30] sm:$0xff]
        %v1505 = vld [vmem:[#allocation8 + $0x38] sm:$0xff]
        %v1506 = vmul.f32 %v1346, %v1498
        %v1507 = vmul.f32 %v1347, %v1499
        %v1508 = vmul.f32 %v1346, %v1500
        %v1509 = vmul.f32 %v1347, %v1501
        %v1510 = vmul.f32 %v1346, %v1502
        %v1511 = vmul.f32 %v1347, %v1503
        %v1512 = vmul.f32 %v1346, %v1504
        %v1513 = vmul.f32 %v1347, %v1505
        %1514 = vadd.xlane.f32.xlu0 %v1506
        %v1515 = vpop.xlane.xlu0 %1514
        %1516 = vadd.xlane.f32.xlu0 %v1507
        %v1517 = vpop.xlane.xlu0 %1516
        %1518 = vadd.xlane.f32.xlu0 %v1508
        %v1519 = vpop.xlane.xlu0 %1518
        %1520 = vadd.xlane.f32.xlu0 %v1509
        %v1521 = vpop.xlane.xlu0 %1520
        %1522 = vadd.xlane.f32.xlu0 %v1510
        %v1523 = vpop.xlane.xlu0 %1522
        %1524 = vadd.xlane.f32.xlu0 %v1511
        %v1525 = vpop.xlane.xlu0 %1524
        %1526 = vadd.xlane.f32.xlu0 %v1512
        %v1527 = vpop.xlane.xlu0 %1526
        %1528 = vadd.xlane.f32.xlu0 %v1513
        %v1529 = vpop.xlane.xlu0 %1528
        %vm1530 = vcmask 523264
        %v1532 = vsel %vm1530, %v1490, 0
        %v1535 = vsel %vm1530, %v1491, 0
        %v1538 = vsel %vm1530, %v1492, 0
        %v1541 = vsel %vm1530, %v1493, 0
        %v1544 = vsel %vm1530, %v1494, 0
        %v1547 = vsel %vm1530, %v1495, 0
        %v1550 = vsel %vm1530, %v1496, 0
        %v1553 = vsel %vm1530, %v1497, 0
        %1555 = vmatpush.msra.mxu0 0.0
        %1556 = vmatpush.msra.mxu0 0.0
        %1557 = vmatpush.msra.mxu0 0.0
        %1558 = vmatpush.msra.mxu0 0.0
        %1559 = vmatpush.msra.mxu0 0.0
        %1560 = vmatpush.msra.mxu0 0.0
        %1561 = vmatpush.msra.mxu0 0.0
        %1562 = vmatpush.msra.mxu0 0.0
        %1563 = vmatpush.msra.mxu0 %v1265
        %1564 = vmatpush.msra.mxu0 %v1264
        %1565 = vmatpush.msra.mxu0 %v1263
        %1566 = vmatpush.msra.mxu0 %v1262
        %1567 = vmatpush.msra.mxu0 %v1261
        %1568 = vmatpush.msra.mxu0 %v1260
        %1569 = vmatpush.msra.mxu0 %v1259
        %1570 = vmatpush.msra.mxu0 %v1258
        %1571 = vmatmul.f32.gmra.mxu0 %v1532
        %v1572 = vpop.f32.mrf.mxu0
        %v1573 = vadd.f32 %v1467, %v1572
        %1574 = vmatmul.f32.gmra.mxu0 %v1535
        %v1575 = vpop.f32.mrf.mxu0
        %v1576 = vadd.f32 %v1470, %v1575
        %1577 = vmatmul.f32.gmra.mxu0 %v1538
        %v1578 = vpop.f32.mrf.mxu0
        %v1579 = vadd.f32 %v1473, %v1578
        %1580 = vmatmul.f32.gmra.mxu0 %v1541
        %v1581 = vpop.f32.mrf.mxu0
        %v1582 = vadd.f32 %v1476, %v1581
        %1583 = vmatmul.f32.gmra.mxu0 %v1544
        %v1584 = vpop.f32.mrf.mxu0
        %v1585 = vadd.f32 %v1479, %v1584
        %1586 = vmatmul.f32.gmra.mxu0 %v1547
        %v1587 = vpop.f32.mrf.mxu0
        %v1588 = vadd.f32 %v1482, %v1587
        %1589 = vmatmul.f32.gmra.mxu0 %v1550
        %v1590 = vpop.f32.mrf.mxu0
        %v1591 = vadd.f32 %v1485, %v1590
        %1592 = vmatmul.f32.gmra.mxu0 %v1553
        %v1593 = vpop.f32.mrf.mxu0
        %v1594 = vadd.f32 %v1488, %v1593
        %1595 = vdwg.mxu0
        %v1596 = vadd.f32 %v1573, %v1515
        %v1597 = vadd.f32 %v1576, %v1517
        %v1598 = vadd.f32 %v1579, %v1519
        %v1599 = vadd.f32 %v1582, %v1521
        %v1600 = vadd.f32 %v1585, %v1523
        %v1601 = vadd.f32 %v1588, %v1525
        %v1602 = vadd.f32 %v1591, %v1527
        %v1603 = vadd.f32 %v1594, %v1529
        %v1604 = vld [vmem:[%s19] sm:$0xff]
        %v1605 = vld [vmem:[%s19 + $0x8] sm:$0xff]
        %v1606 = vld [vmem:[%s19 + $0x10] sm:$0xff]
        %v1607 = vld [vmem:[%s19 + $0x18] sm:$0xff]
        %v1608 = vld [vmem:[%s19 + $0x20] sm:$0xff]
        %v1609 = vld [vmem:[%s19 + $0x28] sm:$0xff]
        %v1610 = vld [vmem:[%s19 + $0x30] sm:$0xff]
        %v1611 = vld [vmem:[%s19 + $0x38] sm:$0xff]
        %1613 = vset.pattern.permute.xlu0 0
        %1614 = vperm.xlu0 %1613, %v1604
        %v1615 = vpop.permute.xlu0 %1614
        %1618 = vset.pattern.permute.xlu0 0
        %1619 = vperm.xlu0 %1618, %v1605
        %v1620 = vpop.permute.xlu0 %1619
        %1623 = vset.pattern.permute.xlu0 0
        %1624 = vperm.xlu0 %1623, %v1606
        %v1625 = vpop.permute.xlu0 %1624
        %1628 = vset.pattern.permute.xlu0 0
        %1629 = vperm.xlu0 %1628, %v1607
        %v1630 = vpop.permute.xlu0 %1629
        %1633 = vset.pattern.permute.xlu0 0
        %1634 = vperm.xlu0 %1633, %v1608
        %v1635 = vpop.permute.xlu0 %1634
        %1638 = vset.pattern.permute.xlu0 0
        %1639 = vperm.xlu0 %1638, %v1609
        %v1640 = vpop.permute.xlu0 %1639
        %1643 = vset.pattern.permute.xlu0 0
        %1644 = vperm.xlu0 %1643, %v1610
        %v1645 = vpop.permute.xlu0 %1644
        %1648 = vset.pattern.permute.xlu0 0
        %1649 = vperm.xlu0 %1648, %v1611
        %v1650 = vpop.permute.xlu0 %1649
        %v1652 = vadd.f32 %v1596, %v1615
        %v1653 = vadd.f32 %v1597, %v1620
        %v1654 = vadd.f32 %v1598, %v1625
        %v1655 = vadd.f32 %v1599, %v1630
        %v1656 = vadd.f32 %v1600, %v1635
        %v1657 = vadd.f32 %v1601, %v1640
        %v1658 = vadd.f32 %v1602, %v1645
        %v1659 = vadd.f32 %v1603, %v1650
        %v1660 = vadd.f32 %v1652, %v1654
        %v1661 = vadd.f32 %v1653, %v1655
        %v1662 = vadd.f32 %v1660, %v1656
        %v1663 = vadd.f32 %v1661, %v1657
        %v1664 = vadd.f32 %v1662, %v1658
        %v1665 = vadd.f32 %v1663, %v1659
        %v1666 = vmul.f32 %v1664, 0.25
        %v1667 = vmul.f32 %v1665, 0.25
        %v1669 = vsel %vm1177, %v1666, 0
        %v1672 = vsel %vm1177, %v1667, 0
        %1674 = vmatpush.msra.mxu0 0.0
        %1675 = vmatpush.msra.mxu0 0.0
        %1676 = vmatpush.msra.mxu0 0.0
        %1677 = vmatpush.msra.mxu0 0.0
        %1678 = vmatpush.msra.mxu0 0.0
        %1679 = vmatpush.msra.mxu0 0.0
        %1680 = vmatpush.msra.mxu0 0.0
        %1681 = vmatpush.msra.mxu0 0.0
        %1682 = vmatpush.msra.mxu0 0.0
        %1683 = vmatpush.msra.mxu0 0.0
        %1684 = vmatpush.msra.mxu0 0.0
        %1685 = vmatpush.msra.mxu0 0.0
        %1686 = vmatpush.msra.mxu0 0.0
        %1687 = vmatpush.msra.mxu0 0.0
        %1688 = vmatpush.msra.mxu0 %v1347
        %1689 = vmatpush.msra.mxu0 %v1346
        %1690 = vmatmul.f32.gmra.mxu0 %v1669
        %v1691 = vpop.f32.mrf.mxu0
        %v1692 = vadd.f32 0.0, %v1691
        %1693 = vmatmul.f32.gmra.mxu0 %v1672
        %v1694 = vpop.f32.mrf.mxu0
        %v1695 = vadd.f32 0.0, %v1694
        %1696 = vdwg.mxu0
        %1697 = vmatpush.msra.mxu0 %v1318
        %1698 = vmatpush.msra.mxu0 %v1317
        %1699 = vmatpush.msra.mxu0 %v1316
        %1700 = vmatpush.msra.mxu0 %v1315
        %1701 = vmatpush.msra.mxu0 %v1314
        %1702 = vmatpush.msra.mxu0 %v1313
        %1703 = vmatpush.msra.mxu0 %v1312
        %1704 = vmatpush.msra.mxu0 %v1311
        %1705 = vmatpush.msra.mxu0 %v1310
        %1706 = vmatpush.msra.mxu0 %v1309
        %1707 = vmatpush.msra.mxu0 %v1308
        %1708 = vmatpush.msra.mxu0 %v1307
        %1709 = vmatpush.msra.mxu0 %v1306
        %1710 = vmatpush.msra.mxu0 %v1305
        %1711 = vmatpush.msra.mxu0 %v1304
        %1712 = vmatpush.msra.mxu0 %v1303
        %1713 = vmatmul.f32.gmra.mxu0 %v1692
        %v1714 = vpop.f32.mrf.mxu0
        %v1715 = vadd.f32 %v1321, %v1714
        %1716 = vmatmul.f32.gmra.mxu0 %v1695
        %v1717 = vpop.f32.mrf.mxu0
        %v1718 = vadd.f32 %v1321, %v1717
        %1719 = vdwg.mxu0
        %v1720 = vmax.f32 %v1715, 0.0
        %v1721 = vmax.f32 %v1718, 0.0
        %v1722 = vld [vmem:[#allocation10] sm:$0xff]
        %v1723 = vld [vmem:[#allocation10 + $0x8] sm:$0xff]
        %v1724 = vld [vmem:[#allocation10 + $0x10] sm:$0xff]
        %v1725 = vld [vmem:[#allocation10 + $0x18] sm:$0xff]
        %v1726 = vld [vmem:[#allocation10 + $0x20] sm:$0xff]
        %v1727 = vld [vmem:[#allocation10 + $0x28] sm:$0xff]
        %v1728 = vld [vmem:[#allocation10 + $0x30] sm:$0xff]
        %v1729 = vld [vmem:[#allocation10 + $0x38] sm:$0xff]
        %v1730 = vld [vmem:[#allocation10 + $0x40] sm:$0xff]
        %v1731 = vld [vmem:[#allocation10 + $0x48] sm:$0xff]
        %v1732 = vld [vmem:[#allocation10 + $0x50] sm:$0xff]
        %v1733 = vld [vmem:[#allocation10 + $0x58] sm:$0xff]
        %v1734 = vld [vmem:[#allocation10 + $0x60] sm:$0xff]
        %v1735 = vld [vmem:[#allocation10 + $0x68] sm:$0xff]
        %v1736 = vld [vmem:[#allocation10 + $0x70] sm:$0xff]
        %v1737 = vld [vmem:[#allocation10 + $0x78] sm:$0xff]
        %v1738 = vld [vmem:[#allocation10 + $0x80] sm:$0xff]
        %v1739 = vld [vmem:[#allocation10 + $0x88] sm:$0xff]
        %v1740 = vld [vmem:[#allocation10 + $0x90] sm:$0xff]
        %v1741 = vld [vmem:[#allocation10 + $0x98] sm:$0xff]
        %v1742 = vld [vmem:[#allocation10 + $0xa0] sm:$0xff]
        %v1743 = vld [vmem:[#allocation10 + $0xa8] sm:$0xff]
        %v1744 = vld [vmem:[#allocation10 + $0xb0] sm:$0xff]
        %v1745 = vld [vmem:[#allocation10 + $0xb8] sm:$0xff]
        %v1746 = vld [vmem:[#allocation10 + $0xc0] sm:$0xff]
        %v1747 = vld [vmem:[#allocation10 + $0xc8] sm:$0xff]
        %v1748 = vld [vmem:[#allocation10 + $0xd0] sm:$0xff]
        %v1749 = vld [vmem:[#allocation10 + $0xd8] sm:$0xff]
        %v1750 = vld [vmem:[#allocation10 + $0xe0] sm:$0xff]
        %v1751 = vld [vmem:[#allocation10 + $0xe8] sm:$0xff]
        %v1752 = vld [vmem:[#allocation10 + $0xf0] sm:$0xff]
        %v1753 = vld [vmem:[#allocation10 + $0xf8] sm:$0xff]
        %v1754 = vld [vmem:[#allocation10 + $0x100] sm:$0xff]
        %v1755 = vld [vmem:[#allocation10 + $0x108] sm:$0xff]
        %v1756 = vld [vmem:[#allocation10 + $0x110] sm:$0xff]
        %v1757 = vld [vmem:[#allocation10 + $0x118] sm:$0xff]
        %v1758 = vld [vmem:[#allocation10 + $0x120] sm:$0xff]
        %v1759 = vld [vmem:[#allocation10 + $0x128] sm:$0xff]
        %v1760 = vld [vmem:[#allocation10 + $0x130] sm:$0xff]
        %v1761 = vld [vmem:[#allocation10 + $0x138] sm:$0xff]
        %v1762 = vld [vmem:[#allocation10 + $0x140] sm:$0xff]
        %v1763 = vld [vmem:[#allocation10 + $0x148] sm:$0xff]
        %v1764 = vld [vmem:[#allocation10 + $0x150] sm:$0xff]
        %v1765 = vld [vmem:[#allocation10 + $0x158] sm:$0xff]
        %v1766 = vld [vmem:[#allocation10 + $0x160] sm:$0xff]
        %v1767 = vld [vmem:[#allocation10 + $0x168] sm:$0xff]
        %v1768 = vld [vmem:[#allocation10 + $0x170] sm:$0xff]
        %v1769 = vld [vmem:[#allocation10 + $0x178] sm:$0xff]
        %v1770 = vld [vmem:[%s21] sm:$0x1]
        %v1772 = vperm.slane %v1770, 0
        %1774 = vmatpush.msra.mxu0 %v1737
        %1775 = vmatpush.msra.mxu0 %v1736
        %1776 = vmatpush.msra.mxu0 %v1735
        %1777 = vmatpush.msra.mxu0 %v1734
        %1778 = vmatpush.msra.mxu0 %v1733
        %1779 = vmatpush.msra.mxu0 %v1732
        %1780 = vmatpush.msra.mxu0 %v1731
        %1781 = vmatpush.msra.mxu0 %v1730
        %1782 = vmatpush.msra.mxu0 %v1729
        %1783 = vmatpush.msra.mxu0 %v1728
        %1784 = vmatpush.msra.mxu0 %v1727
        %1785 = vmatpush.msra.mxu0 %v1726
        %1786 = vmatpush.msra.mxu0 %v1725
        %1787 = vmatpush.msra.mxu0 %v1724
        %1788 = vmatpush.msra.mxu0 %v1723
        %1789 = vmatpush.msra.mxu0 %v1722
        %1790 = vmatmul.f32.gmra.mxu0 %v992
        %v1791 = vpop.f32.mrf.mxu0
        %v1792 = vadd.f32 %v1772, %v1791
        %1793 = vmatmul.f32.gmra.mxu0 %v995
        %v1794 = vpop.f32.mrf.mxu0
        %v1795 = vadd.f32 %v1772, %v1794
        %1796 = vdwg.mxu0
        %1797 = vmatpush.msra.mxu0 %v1753
        %1798 = vmatpush.msra.mxu0 %v1752
        %1799 = vmatpush.msra.mxu0 %v1751
        %1800 = vmatpush.msra.mxu0 %v1750
        %1801 = vmatpush.msra.mxu0 %v1749
        %1802 = vmatpush.msra.mxu0 %v1748
        %1803 = vmatpush.msra.mxu0 %v1747
        %1804 = vmatpush.msra.mxu0 %v1746
        %1805 = vmatpush.msra.mxu0 %v1745
        %1806 = vmatpush.msra.mxu0 %v1744
        %1807 = vmatpush.msra.mxu0 %v1743
        %1808 = vmatpush.msra.mxu0 %v1742
        %1809 = vmatpush.msra.mxu0 %v1741
        %1810 = vmatpush.msra.mxu0 %v1740
        %1811 = vmatpush.msra.mxu0 %v1739
        %1812 = vmatpush.msra.mxu0 %v1738
        %1813 = vmatmul.f32.gmra.mxu0 %v1346
        %v1814 = vpop.f32.mrf.mxu0
        %v1815 = vadd.f32 %v1792, %v1814
        %1816 = vmatmul.f32.gmra.mxu0 %v1347
        %v1817 = vpop.f32.mrf.mxu0
        %v1818 = vadd.f32 %v1795, %v1817
        %1819 = vdwg.mxu0
        %1820 = vmatpush.msra.mxu0 %v1769
        %1821 = vmatpush.msra.mxu0 %v1768
        %1822 = vmatpush.msra.mxu0 %v1767
        %1823 = vmatpush.msra.mxu0 %v1766
        %1824 = vmatpush.msra.mxu0 %v1765
        %1825 = vmatpush.msra.mxu0 %v1764
        %1826 = vmatpush.msra.mxu0 %v1763
        %1827 = vmatpush.msra.mxu0 %v1762
        %1828 = vmatpush.msra.mxu0 %v1761
        %1829 = vmatpush.msra.mxu0 %v1760
        %1830 = vmatpush.msra.mxu0 %v1759
        %1831 = vmatpush.msra.mxu0 %v1758
        %1832 = vmatpush.msra.mxu0 %v1757
        %1833 = vmatpush.msra.mxu0 %v1756
        %1834 = vmatpush.msra.mxu0 %v1755
        %1835 = vmatpush.msra.mxu0 %v1754
        %1836 = vmatmul.f32.gmra.mxu0 %v1720
        %v1837 = vpop.f32.mrf.mxu0
        %v1838 = vadd.f32 %v1815, %v1837
        %1839 = vmatmul.f32.gmra.mxu0 %v1721
        %v1840 = vpop.f32.mrf.mxu0
        %v1841 = vadd.f32 %v1818, %v1840
        %1842 = vdwg.mxu0
        %v1843 = vmax.f32 %v1838, 0.0
        %v1844 = vmax.f32 %v1841, 0.0
        %v1845 = vld [vmem:[%s882] sm:$0x1]
        %vm1846 = vcmask 122880
        %v1847 = vsel %vm1846, %v1845, 0.0
        %1848 = vadd.xlane.f32.xlu0 %v1847
        %v1849 = vpop.xlane.xlu0 %1848
        %v1850 = vmax.f32 %v1849, 1.0
        %v1851 = vadd.f32 %v1843, %v1844
        %v1852 = vrot.slane %v1851, 4
        %v1853 = vadd.f32 %v1851, %v1852
        %v1854 = vrot.slane %v1853, 2
        %v1855 = vadd.f32 %v1853, %v1854
        %v1856 = vrot.slane %v1855, 1
        %v1857 = vadd.f32 %v1855, %v1856
        %v1858 = vrcp.pop %v1850
        %v1859 = vmul.f32 %v1857, %v1858
        %v1860 = vld [vmem:[#allocation11] sm:$0xff]
        %v1861 = vld [vmem:[#allocation11 + $0x8] sm:$0xff]
        %v1862 = vld [vmem:[#allocation11 + $0x10] sm:$0xff]
        %v1863 = vld [vmem:[#allocation11 + $0x18] sm:$0xff]
        %v1864 = vld [vmem:[#allocation11 + $0x20] sm:$0xff]
        %v1865 = vld [vmem:[#allocation11 + $0x28] sm:$0xff]
        %v1866 = vld [vmem:[#allocation11 + $0x30] sm:$0xff]
        %v1867 = vld [vmem:[#allocation11 + $0x38] sm:$0xff]
        %v1868 = vld [vmem:[#allocation11 + $0x40] sm:$0xff]
        %v1869 = vld [vmem:[#allocation11 + $0x48] sm:$0xff]
        %v1870 = vld [vmem:[#allocation11 + $0x50] sm:$0xff]
        %v1871 = vld [vmem:[#allocation11 + $0x58] sm:$0xff]
        %v1872 = vld [vmem:[#allocation11 + $0x60] sm:$0xff]
        %v1873 = vld [vmem:[#allocation11 + $0x68] sm:$0xff]
        %v1874 = vld [vmem:[#allocation11 + $0x70] sm:$0xff]
        %v1875 = vld [vmem:[#allocation11 + $0x78] sm:$0xff]
        %v1876 = vld [vmem:[%s23] sm:$0x1]
        %1877 = vmatpush.msra.mxu0 %v1875
        %1878 = vmatpush.msra.mxu0 %v1874
        %1879 = vmatpush.msra.mxu0 %v1873
        %1880 = vmatpush.msra.mxu0 %v1872
        %1881 = vmatpush.msra.mxu0 %v1871
        %1882 = vmatpush.msra.mxu0 %v1870
        %1883 = vmatpush.msra.mxu0 %v1869
        %1884 = vmatpush.msra.mxu0 %v1868
        %1885 = vmatpush.msra.mxu0 %v1867
        %1886 = vmatpush.msra.mxu0 %v1866
        %1887 = vmatpush.msra.mxu0 %v1865
        %1888 = vmatpush.msra.mxu0 %v1864
        %1889 = vmatpush.msra.mxu0 %v1863
        %1890 = vmatpush.msra.mxu0 %v1862
        %1891 = vmatpush.msra.mxu0 %v1861
        %1892 = vmatpush.msra.mxu0 %v1860
        %1893 = vmatmul.f32.gmra.mxu0 %v1859
        %v1894 = vpop.f32.mrf.mxu0
        %v1895 = vadd.f32 %v1876, %v1894
        %1896 = vdwg.mxu0
        %1897 = vst [vmem:[%s876] sm:$0x1] %v1895
        %s1898 = sand.u32 %s576, 1
        %s1899 = scalar_lea.sflag [#allocation4], %s1898
        %s1900 = sand.u32 %s576, 1
        %s1901 = scalar_lea.vmem [#allocation13], %s1900
        // Predicated region
        $region141: #{tpu_custom_call.1} parent=115 // pred_check
          %p1902 = pneg %p586
        $region142: #{tpu_custom_call.1} parent=115 // pred_check_branch
          %1904 = sbr.rel (%p1902) target = $region144
        $region143: #{tpu_custom_call.1} parent=115 // pred_region
          %1906 = vsyncadd %s1899, 0
          %s1907 = scalar_lea.hbm %s24, %s44
          %s1909 = sshll.u32 %s1901, 4
          %s1910 = int_to_ptr.vmem [resolvable:$true] %s1909
          %s1911 = sshll.u32 %s1907, 4
          %s1912 = int_to_ptr.hbm [resolvable:$true] %s1911
          %1914 = dma.vmem_to_hbm [thread:$0]  %s1910, 16, %s1912, %s1899
        $region144: #{tpu_custom_call.1} parent=115 // pred_fallthru
          _
      $region116: #{tpu_custom_call.1} parent=5 // pred_fallthru
        _
      %p1915 = scmp.le.s32.totalorder 2, %s39
      // Predicated region
      $region145: #{tpu_custom_call.1} parent=5 // pred_check
        %p1916 = pneg %p1915
      $region146: #{tpu_custom_call.1} parent=5 // pred_check_branch
        %1918 = sbr.rel (%p1916) target = $region148
      $region147: #{tpu_custom_call.1} parent=5 // pred_region
        %s1919 = ssub.s32 %s39, 2
        // Predicated region
        $region149: #{tpu_custom_call.1} parent=147 // pred_check
          %p1920 = pneg %p592
        $region150: #{tpu_custom_call.1} parent=147 // pred_check_branch
          %1922 = sbr.rel (%p1920) target = $region152
        $region151: #{tpu_custom_call.1} parent=147 // pred_region
          %s1923 = sand.u32 %s577, 1
          %s1924 = scalar_lea.sflag [#allocation4], %s1923
          %s1925 = sand.u32 %s577, 1
          %s1926 = scalar_lea.vmem [#allocation13], %s1925
          %1928 = dma.done %s1924, 16
        $region152: #{tpu_custom_call.1} parent=147 // pred_fallthru
          _
      $region148: #{tpu_custom_call.1} parent=5 // pred_fallthru
        _
    $region6: #{tpu_custom_call.1} parent=1 // loop_footer
      %s43 = sadd.s32 1, %s39
    $region7: #{tpu_custom_call.1} parent=1 // loop_footer_branch
      %38 = sbr.rel target = $region3
    $region8: #{tpu_custom_call.1} parent=1 // loop_exit
      _
    %1929 = vsyncpa [#allocation3], 1
    %s1930 = scalar_lea.sflag [#allocation3], 1
    %1931 = vsyncpa %s1930, 1
    %1932 = vsyncpa [#allocation6], 1
    %1933 = vsyncpa [#allocation9], 1
    %1934 = vsyncpa [#allocation12], 1
    %1935 = vsyncpa [#allocation4], 1
    %s1936 = scalar_lea.sflag [#allocation4], 1
    %1937 = vsyncpa %s1936, 1

</llo_original>
